<compile_context>
chip_gen: v6e
topology: v6e:2x2x1
jax: 0.10.0
libtpu: 0.0.40
codegen_flags: <defaults>
</compile_context>

<pallas_src>
import jax
import jax.numpy as jnp
from jax import lax
from jax.experimental import pallas as pl
from jax.experimental.pallas import tpu as pltpu

HIDDEN = 32  # matches hidden_size=32 in LSTM_layer.__init__


def _lstm_fused_kernel(x_ref, wih_ref, whh_ref, bg_ref, wfc_ref, bfc_ref,
                       wcv_ref, bcv_ref, out_ref, gx_ref, hs_ref):
    """One grid step == one batch block. Whole sequence handled in-kernel."""
    T, B_BLK, C = x_ref.shape
    H = whh_ref.shape[0]
    OC = wfc_ref.shape[1]

    # ---- Phase 1: input projection for all timesteps (single big matmul) ----
    x2 = x_ref[...].reshape(T * B_BLK, C).astype(jnp.float32)         # (T*B, C)
    gx = jnp.dot(x2, wih_ref[...], preferred_element_type=jnp.float32) + bg_ref[...]
    gx_ref[...] = gx.reshape(T, B_BLK, 4 * H)                          # (T, B, 4H)

    # ---- Phase 2: recurrence (only h @ W_hh^T is on the serial path) ----
    # Full-width nonlinearities + lane-mask blend (hoisted iota, EUP tanh).
    lane = lax.broadcasted_iota(jnp.int32, (B_BLK, 4 * H), 1)
    is_g = (lane >= 2 * H) & (lane < 3 * H)                            # tanh gate lanes
    whh = whh_ref[...]                                                 # (H, 4H) resident

    def step(t, carry):
        h, c = carry
        gates = gx_ref[t] + jnp.dot(h, whh, preferred_element_type=jnp.float32)
        sig = 0.5 * jnp.tanh(0.5 * gates) + 0.5                        # sigmoid via EUP tanh
        tnh = jnp.tanh(gates)
        act = jnp.where(is_g, tnh, sig)                                # (B, 4H)
        i_g = act[:, 0 * H:1 * H]
        f_g = act[:, 1 * H:2 * H]
        g_g = act[:, 2 * H:3 * H]
        o_g = act[:, 3 * H:4 * H]
        c_new = f_g * c + i_g * g_g
        h_new = o_g * jnp.tanh(c_new)
        hs_ref[t] = h_new
        return h_new, c_new

    h0 = jnp.zeros((B_BLK, H), jnp.float32)
    c0 = jnp.zeros((B_BLK, H), jnp.float32)
    lax.fori_loop(0, T, step, (h0, c0), unroll=True)

    # ---- Phase 3: head (Linear -> 1x1 conv -> ReLU -> residual), batched over T*B ----
    hs = hs_ref[...].reshape(T * B_BLK, H)
    z = jnp.dot(hs, wfc_ref[...], preferred_element_type=jnp.float32) + bfc_ref[...]
    conv = jnp.dot(z, wcv_ref[...], preferred_element_type=jnp.float32) + bcv_ref[...]
    y = jnp.maximum(conv, 0.0) + z
    out_ref[...] = y.reshape(T, B_BLK, OC).astype(out_ref.dtype)       # single writeback


def lstm_layer_forward(x, params):
    """x: (b, c, t, n) float32.  Returns (b, out_channel, t, n) like PyTorch."""
    b, c, t, n = x.shape
    B = b * n
    wih, whh = params["w_ih"], params["w_hh"]          # (4H, C), (4H, H)
    bih, bhh = params["b_ih"], params["b_hh"]          # (4H,), (4H,)
    wfc, bfc = params["w_fc"], params["b_fc"]          # (OC, H), (OC,)
    wcv, bcv = params["w_conv"], params["b_conv"]      # (OC, OC, 1, 1), (OC,)
    H = wih.shape[0] // 4
    OC = wfc.shape[0]

    # (b, c, t, n) -> (t, b, n, c) -> (T, B, C); flat batch index = b*n + n_idx,
    # matching PyTorch's permute(0,3,2,1).view(-1, t, c).
    x_v = jnp.transpose(x, (2, 0, 3, 1)).reshape(t, B, c)

    # Two parallel batch blocks when divisibility allows (feeds both v7x TensorCores;
    # harmless sequential loop of 2 on v5e/v6e).
    if B % 16 == 0:
        B_BLK = B // 2
    else:
        B_BLK = B
    NB = B // B_BLK

    wih_t = wih.T                                  # (C, 4H)
    whh_t = whh.T                                  # (H, 4H)
    bg = (bih + bhh).reshape(1, 4 * H)             # (1, 4H)
    wfc_t = wfc.T                                  # (H, OC)
    bfc_r = bfc.reshape(1, OC)
    wcv_t = wcv.reshape(OC, OC).T                  # (OC_in, OC_out)
    bcv_r = bcv.reshape(1, OC)

    out = pl.pallas_call(
        _lstm_fused_kernel,
        out_shape=jax.ShapeDtypeStruct((t, B, OC), x.dtype),
        grid_spec=pltpu.PrefetchScalarGridSpec(
            num_scalar_prefetch=0,
            grid=(NB,),
            in_specs=[
                pl.BlockSpec((t, B_BLK, c), lambda j: (0, j, 0)),   # x (batch block)
                pl.BlockSpec((c, 4 * H), lambda j: (0, 0)),         # W_ih^T
                pl.BlockSpec((H, 4 * H), lambda j: (0, 0)),         # W_hh^T
                pl.BlockSpec((1, 4 * H), lambda j: (0, 0)),         # gate bias
                pl.BlockSpec((H, OC), lambda j: (0, 0)),            # W_fc^T
                pl.BlockSpec((1, OC), lambda j: (0, 0)),            # b_fc
                pl.BlockSpec((OC, OC), lambda j: (0, 0)),           # W_conv^T
                pl.BlockSpec((1, OC), lambda j: (0, 0)),            # b_conv
            ],
            out_specs=pl.BlockSpec((t, B_BLK, OC), lambda j: (0, j, 0)),
            scratch_shapes=[
                pltpu.VMEM((t, B_BLK, 4 * H), jnp.float32),  # gates_x slab
                pltpu.VMEM((t, B_BLK, H), jnp.float32),      # h_t slab
            ],
        ),
        compiler_params=pltpu.CompilerParams(
            dimension_semantics=("parallel",)),   # batch blocks are independent
    )(x_v, wih_t, whh_t, bg, wfc_t, bfc_r, wcv_t, bcv_r)

    # (T, B, OC) -> (T, b, n, OC) -> (b, OC, T, n)
    out = out.reshape(t, b, n, OC)
    return jnp.transpose(out, (1, 3, 0, 2))


def ref_forward(x, params):
    """Pure-JAX reference matching PyTorch LSTM_layer.forward semantics."""
    b, c, t, n = x.shape
    B = b * n
    wih, whh = params["w_ih"], params["w_hh"]
    bih, bhh = params["b_ih"], params["b_hh"]
    wfc, bfc = params["w_fc"], params["b_fc"]
    wcv, bcv = params["w_conv"], params["b_conv"]
    H = wih.shape[0] // 4
    OC = wfc.shape[0]

    x_v = jnp.transpose(x, (2, 0, 3, 1)).reshape(t, B, c)   # time-major

    def step(carry, x_t):
        h, cs = carry
        gates = x_t @ wih.T + bih + h @ whh.T + bhh
        i = jax.nn.sigmoid(gates[:, :H])
        f = jax.nn.sigmoid(gates[:, H:2 * H])
        g = jnp.tanh(gates[:, 2 * H:3 * H])
        o = jax.nn.sigmoid(gates[:, 3 * H:])
        cs = f * cs + i * g
        h = o * jnp.tanh(cs)
        return (h, cs), h

    init = (jnp.zeros((B, H), jnp.float32), jnp.zeros((B, H), jnp.float32))
    _, hs = lax.scan(step, init, x_v)                       # (T, B, H)
    z = hs @ wfc.T + bfc                                    # (T, B, OC)
    y = jnp.maximum(z @ wcv.reshape(OC, OC).T + bcv, 0.0) + z
    out = y.reshape(t, b, n, OC)
    return jnp.transpose(out, (1, 3, 0, 2))                 # (b, OC, t, n)


if __name__ == "__main__":
    b, c, t, n = 2, 4, 8, 16       # (batch, input_channel, timesteps, num_nodes)
    OC = 4                         # out_channel
    H = HIDDEN

    key = jax.random.PRNGKey(0)
    keys = jax.random.split(key, 9)
    s = 1.0 / jnp.sqrt(jnp.float32(H))
    params = {
        "w_ih":   jax.random.uniform(keys[0], (4 * H, c), jnp.float32, -s, s),
        "w_hh":   jax.random.uniform(keys[1], (4 * H, H), jnp.float32, -s, s),
        "b_ih":   jax.random.uniform(keys[2], (4 * H,), jnp.float32, -s, s),
        "b_hh":   jax.random.uniform(keys[3], (4 * H,), jnp.float32, -s, s),
        "w_fc":   jax.random.uniform(keys[4], (OC, H), jnp.float32, -s, s),
        "b_fc":   jax.random.uniform(keys[5], (OC,), jnp.float32, -s, s),
        "w_conv": jax.random.uniform(keys[6], (OC, OC, 1, 1), jnp.float32, -0.5, 0.5),
        "b_conv": jax.random.uniform(keys[7], (OC,), jnp.float32, -0.5, 0.5),
    }
    x = jax.random.normal(keys[8], (b, c, t, n), jnp.float32)

    out = jax.block_until_ready(lstm_layer_forward(x, params))
    ref = jax.block_until_ready(ref_forward(x, params))

    assert out.shape == (b, OC, t, n), out.shape
    max_err = float(jnp.max(jnp.abs(out - ref)))
    if max_err > 2e-2:
        raise AssertionError(f"Pallas kernel mismatch vs reference: max_err={max_err}")
    print("KERNEL_OK")
</pallas_src>

<mosaic_0001>
module attributes {stable_mosaic.version = 11 : i64} {
  func.func @_lstm_fused_kernel(%arg0: i32, %arg1: memref<8x16x4xf32, #tpu.memory_space<vmem>>, %arg2: memref<4x128xf32, #tpu.memory_space<vmem>>, %arg3: memref<32x128xf32, #tpu.memory_space<vmem>>, %arg4: memref<1x128xf32, #tpu.memory_space<vmem>>, %arg5: memref<32x4xf32, #tpu.memory_space<vmem>>, %arg6: memref<1x4xf32, #tpu.memory_space<vmem>>, %arg7: memref<4x4xf32, #tpu.memory_space<vmem>>, %arg8: memref<1x4xf32, #tpu.memory_space<vmem>>, %arg9: memref<8x16x4xf32, #tpu.memory_space<vmem>>, %arg10: memref<8x16x128xf32, #tpu.memory_space<vmem>>, %arg11: memref<8x16x32xf32, #tpu.memory_space<vmem>>) attributes {dimension_semantics = [#tpu.dimension_semantics<parallel>], iteration_bounds = array<i64: 2>, scalar_prefetch = 0 : i64, scratch_operands = 2 : i64, tpu.core_type = #tpu.core_type<tc>, window_params = [{transform_indices = @transform_0, window_bounds = array<i64: 8, 16, 4>}, {pipeline_mode = #tpu.pipeline_mode<synchronous>, transform_indices = @transform_1, window_bounds = array<i64: 4, 128>}, {pipeline_mode = #tpu.pipeline_mode<synchronous>, transform_indices = @transform_2, window_bounds = array<i64: 32, 128>}, {pipeline_mode = #tpu.pipeline_mode<synchronous>, transform_indices = @transform_3, window_bounds = array<i64: 1, 128>}, {pipeline_mode = #tpu.pipeline_mode<synchronous>, transform_indices = @transform_4, window_bounds = array<i64: 32, 4>}, {pipeline_mode = #tpu.pipeline_mode<synchronous>, transform_indices = @transform_5, window_bounds = array<i64: 1, 4>}, {pipeline_mode = #tpu.pipeline_mode<synchronous>, transform_indices = @transform_6, window_bounds = array<i64: 4, 4>}, {pipeline_mode = #tpu.pipeline_mode<synchronous>, transform_indices = @transform_7, window_bounds = array<i64: 1, 4>}, {transform_indices = @transform_8, window_bounds = array<i64: 8, 16, 4>}]} {
    %c0 = arith.constant 0 : index
    %c0_0 = arith.constant 0 : index
    %c0_1 = arith.constant 0 : index
    %0 = vector.load %arg1[%c0, %c0_0, %c0_1] : memref<8x16x4xf32, #tpu.memory_space<vmem>>, vector<8x16x4xf32>
    %1 = vector.shape_cast %0 : vector<8x16x4xf32> to vector<128x4xf32>
    %c0_2 = arith.constant 0 : index
    %c0_3 = arith.constant 0 : index
    %2 = vector.load %arg2[%c0_2, %c0_3] : memref<4x128xf32, #tpu.memory_space<vmem>>, vector<4x128xf32>
    %cst = arith.constant dense<0.000000e+00> : vector<128x128xf32>
    %3 = tpu.matmul %1, %2, %cst {dimension_numbers = #tpu.dot_dimension_numbers<[1], [0], [0], [1], [0, 0, 1, 1], [], []>} : vector<128x4xf32>, vector<4x128xf32>, vector<128x128xf32> -> vector<128x128xf32>
    %c0_4 = arith.constant 0 : index
    %c0_5 = arith.constant 0 : index
    %4 = vector.load %arg4[%c0_4, %c0_5] : memref<1x128xf32, #tpu.memory_space<vmem>>, vector<1x128xf32>
    %5 = vector.broadcast %4 : vector<1x128xf32> to vector<128x128xf32>
    %6 = arith.addf %3, %5 : vector<128x128xf32>
    %7 = vector.shape_cast %6 : vector<128x128xf32> to vector<8x16x128xf32>
    %c0_6 = arith.constant 0 : index
    %c0_7 = arith.constant 0 : index
    %c0_8 = arith.constant 0 : index
    %8 = vector.load %arg10[%c0_6, %c0_7, %c0_8] : memref<8x16x128xf32, #tpu.memory_space<vmem>>, vector<8x16x128xf32>
    tpu.vector_store %arg10[%c0_6, %c0_7, %c0_8], %7 {strides = array<i32>} : memref<8x16x128xf32, #tpu.memory_space<vmem>>, vector<8x16x128xf32>,
    %9 = tpu.iota {dimensions = array<i32: 1>} : vector<16x128xi32>
    %c64_i32 = arith.constant 64 : i32
    %10 = vector.broadcast %c64_i32 : i32 to vector<16x128xi32>
    %11 = arith.cmpi sge, %9, %10 : vector<16x128xi32>
    %c96_i32 = arith.constant 96 : i32
    %12 = vector.broadcast %c96_i32 : i32 to vector<16x128xi32>
    %13 = arith.cmpi slt, %9, %12 : vector<16x128xi32>
    %14 = arith.andi %11, %13 : vector<16x128xi1>
    %c0_9 = arith.constant 0 : index
    %c0_10 = arith.constant 0 : index
    %15 = vector.load %arg3[%c0_9, %c0_10] : memref<32x128xf32, #tpu.memory_space<vmem>>, vector<32x128xf32>
    %cst_11 = arith.constant 0.000000e+00 : f32
    %16 = vector.broadcast %cst_11 : f32 to vector<16x32xf32>
    %cst_12 = arith.constant 0.000000e+00 : f32
    %17 = vector.broadcast %cst_12 : f32 to vector<16x32xf32>
    %c0_i32 = arith.constant 0 : i32
    %18 = arith.index_cast %c0_i32 : i32 to index
    %c0_13 = arith.constant 0 : index
    %c0_14 = arith.constant 0 : index
    %19 = vector.load %arg10[%18, %c0_13, %c0_14] : memref<8x16x128xf32, #tpu.memory_space<vmem>>, vector<1x16x128xf32>
    %20 = vector.shape_cast %19 : vector<1x16x128xf32> to vector<16x128xf32>
    %cst_15 = arith.constant dense<0.000000e+00> : vector<16x128xf32>
    %21 = tpu.matmul %16, %15, %cst_15 {dimension_numbers = #tpu.dot_dimension_numbers<[1], [0], [0], [1], [0, 0, 1, 1], [], []>} : vector<16x32xf32>, vector<32x128xf32>, vector<16x128xf32> -> vector<16x128xf32>
    %22 = arith.addf %20, %21 : vector<16x128xf32>
    %cst_16 = arith.constant 5.000000e-01 : f32
    %23 = vector.broadcast %cst_16 : f32 to vector<16x128xf32>
    %24 = arith.mulf %23, %22 : vector<16x128xf32>
    %25 = math.tanh %24 : vector<16x128xf32>
    %cst_17 = arith.constant 5.000000e-01 : f32
    %26 = vector.broadcast %cst_17 : f32 to vector<16x128xf32>
    %27 = arith.mulf %26, %25 : vector<16x128xf32>
    %cst_18 = arith.constant 5.000000e-01 : f32
    %28 = vector.broadcast %cst_18 : f32 to vector<16x128xf32>
    %29 = arith.addf %27, %28 : vector<16x128xf32>
    %30 = math.tanh %22 : vector<16x128xf32>
    %31 = arith.select %14, %30, %29 : vector<16x128xi1>, vector<16x128xf32>
    %32 = vector.extract_strided_slice %31 {offsets = [0, 0], sizes = [16, 32], strides = [1, 1]} : vector<16x128xf32> to vector<16x32xf32>
    %33 = vector.extract_strided_slice %31 {offsets = [0, 32], sizes = [16, 32], strides = [1, 1]} : vector<16x128xf32> to vector<16x32xf32>
    %34 = vector.extract_strided_slice %31 {offsets = [0, 64], sizes = [16, 32], strides = [1, 1]} : vector<16x128xf32> to vector<16x32xf32>
    %35 = vector.extract_strided_slice %31 {offsets = [0, 96], sizes = [16, 32], strides = [1, 1]} : vector<16x128xf32> to vector<16x32xf32>
    %36 = arith.mulf %33, %17 : vector<16x32xf32>
    %37 = arith.mulf %32, %34 : vector<16x32xf32>
    %38 = arith.addf %36, %37 : vector<16x32xf32>
    %39 = math.tanh %38 : vector<16x32xf32>
    %40 = arith.mulf %35, %39 : vector<16x32xf32>
    %41 = arith.index_cast %c0_i32 : i32 to index
    %c0_19 = arith.constant 0 : index
    %c0_20 = arith.constant 0 : index
    %42 = vector.load %arg11[%41, %c0_19, %c0_20] : memref<8x16x32xf32, #tpu.memory_space<vmem>>, vector<1x16x32xf32>
    %43 = vector.shape_cast %42 : vector<1x16x32xf32> to vector<16x32xf32>
    %44 = vector.shape_cast %40 : vector<16x32xf32> to vector<1x16x32xf32>
    tpu.vector_store %arg11[%41, %c0_19, %c0_20], %44 {strides = array<i32>} : memref<8x16x32xf32, #tpu.memory_space<vmem>>, vector<1x16x32xf32>,
    %c1_i32 = arith.constant 1 : i32
    %45 = arith.index_cast %c1_i32 : i32 to index
    %c0_21 = arith.constant 0 : index
    %c0_22 = arith.constant 0 : index
    %46 = vector.load %arg10[%45, %c0_21, %c0_22] : memref<8x16x128xf32, #tpu.memory_space<vmem>>, vector<1x16x128xf32>
    %47 = vector.shape_cast %46 : vector<1x16x128xf32> to vector<16x128xf32>
    %cst_23 = arith.constant dense<0.000000e+00> : vector<16x128xf32>
    %48 = tpu.matmul %40, %15, %cst_23 {dimension_numbers = #tpu.dot_dimension_numbers<[1], [0], [0], [1], [0, 0, 1, 1], [], []>} : vector<16x32xf32>, vector<32x128xf32>, vector<16x128xf32> -> vector<16x128xf32>
    %49 = arith.addf %47, %48 : vector<16x128xf32>
    %cst_24 = arith.constant 5.000000e-01 : f32
    %50 = vector.broadcast %cst_24 : f32 to vector<16x128xf32>
    %51 = arith.mulf %50, %49 : vector<16x128xf32>
    %52 = math.tanh %51 : vector<16x128xf32>
    %cst_25 = arith.constant 5.000000e-01 : f32
    %53 = vector.broadcast %cst_25 : f32 to vector<16x128xf32>
    %54 = arith.mulf %53, %52 : vector<16x128xf32>
    %cst_26 = arith.constant 5.000000e-01 : f32
    %55 = vector.broadcast %cst_26 : f32 to vector<16x128xf32>
    %56 = arith.addf %54, %55 : vector<16x128xf32>
    %57 = math.tanh %49 : vector<16x128xf32>
    %58 = arith.select %14, %57, %56 : vector<16x128xi1>, vector<16x128xf32>
    %59 = vector.extract_strided_slice %58 {offsets = [0, 0], sizes = [16, 32], strides = [1, 1]} : vector<16x128xf32> to vector<16x32xf32>
    %60 = vector.extract_strided_slice %58 {offsets = [0, 32], sizes = [16, 32], strides = [1, 1]} : vector<16x128xf32> to vector<16x32xf32>
    %61 = vector.extract_strided_slice %58 {offsets = [0, 64], sizes = [16, 32], strides = [1, 1]} : vector<16x128xf32> to vector<16x32xf32>
    %62 = vector.extract_strided_slice %58 {offsets = [0, 96], sizes = [16, 32], strides = [1, 1]} : vector<16x128xf32> to vector<16x32xf32>
    %63 = arith.mulf %60, %38 : vector<16x32xf32>
    %64 = arith.mulf %59, %61 : vector<16x32xf32>
    %65 = arith.addf %63, %64 : vector<16x32xf32>
    %66 = math.tanh %65 : vector<16x32xf32>
    %67 = arith.mulf %62, %66 : vector<16x32xf32>
    %68 = arith.index_cast %c1_i32 : i32 to index
    %c0_27 = arith.constant 0 : index
    %c0_28 = arith.constant 0 : index
    %69 = vector.load %arg11[%68, %c0_27, %c0_28] : memref<8x16x32xf32, #tpu.memory_space<vmem>>, vector<1x16x32xf32>
    %70 = vector.shape_cast %69 : vector<1x16x32xf32> to vector<16x32xf32>
    %71 = vector.shape_cast %67 : vector<16x32xf32> to vector<1x16x32xf32>
    tpu.vector_store %arg11[%68, %c0_27, %c0_28], %71 {strides = array<i32>} : memref<8x16x32xf32, #tpu.memory_space<vmem>>, vector<1x16x32xf32>,
    %c2_i32 = arith.constant 2 : i32
    %72 = arith.index_cast %c2_i32 : i32 to index
    %c0_29 = arith.constant 0 : index
    %c0_30 = arith.constant 0 : index
    %73 = vector.load %arg10[%72, %c0_29, %c0_30] : memref<8x16x128xf32, #tpu.memory_space<vmem>>, vector<1x16x128xf32>
    %74 = vector.shape_cast %73 : vector<1x16x128xf32> to vector<16x128xf32>
    %cst_31 = arith.constant dense<0.000000e+00> : vector<16x128xf32>
    %75 = tpu.matmul %67, %15, %cst_31 {dimension_numbers = #tpu.dot_dimension_numbers<[1], [0], [0], [1], [0, 0, 1, 1], [], []>} : vector<16x32xf32>, vector<32x128xf32>, vector<16x128xf32> -> vector<16x128xf32>
    %76 = arith.addf %74, %75 : vector<16x128xf32>
    %cst_32 = arith.constant 5.000000e-01 : f32
    %77 = vector.broadcast %cst_32 : f32 to vector<16x128xf32>
    %78 = arith.mulf %77, %76 : vector<16x128xf32>
    %79 = math.tanh %78 : vector<16x128xf32>
    %cst_33 = arith.constant 5.000000e-01 : f32
    %80 = vector.broadcast %cst_33 : f32 to vector<16x128xf32>
    %81 = arith.mulf %80, %79 : vector<16x128xf32>
    %cst_34 = arith.constant 5.000000e-01 : f32
    %82 = vector.broadcast %cst_34 : f32 to vector<16x128xf32>
    %83 = arith.addf %81, %82 : vector<16x128xf32>
    %84 = math.tanh %76 : vector<16x128xf32>
    %85 = arith.select %14, %84, %83 : vector<16x128xi1>, vector<16x128xf32>
    %86 = vector.extract_strided_slice %85 {offsets = [0, 0], sizes = [16, 32], strides = [1, 1]} : vector<16x128xf32> to vector<16x32xf32>
    %87 = vector.extract_strided_slice %85 {offsets = [0, 32], sizes = [16, 32], strides = [1, 1]} : vector<16x128xf32> to vector<16x32xf32>
    %88 = vector.extract_strided_slice %85 {offsets = [0, 64], sizes = [16, 32], strides = [1, 1]} : vector<16x128xf32> to vector<16x32xf32>
    %89 = vector.extract_strided_slice %85 {offsets = [0, 96], sizes = [16, 32], strides = [1, 1]} : vector<16x128xf32> to vector<16x32xf32>
    %90 = arith.mulf %87, %65 : vector<16x32xf32>
    %91 = arith.mulf %86, %88 : vector<16x32xf32>
    %92 = arith.addf %90, %91 : vector<16x32xf32>
    %93 = math.tanh %92 : vector<16x32xf32>
    %94 = arith.mulf %89, %93 : vector<16x32xf32>
    %95 = arith.index_cast %c2_i32 : i32 to index
    %c0_35 = arith.constant 0 : index
    %c0_36 = arith.constant 0 : index
    %96 = vector.load %arg11[%95, %c0_35, %c0_36] : memref<8x16x32xf32, #tpu.memory_space<vmem>>, vector<1x16x32xf32>
    %97 = vector.shape_cast %96 : vector<1x16x32xf32> to vector<16x32xf32>
    %98 = vector.shape_cast %94 : vector<16x32xf32> to vector<1x16x32xf32>
    tpu.vector_store %arg11[%95, %c0_35, %c0_36], %98 {strides = array<i32>} : memref<8x16x32xf32, #tpu.memory_space<vmem>>, vector<1x16x32xf32>,
    %c3_i32 = arith.constant 3 : i32
    %99 = arith.index_cast %c3_i32 : i32 to index
    %c0_37 = arith.constant 0 : index
    %c0_38 = arith.constant 0 : index
    %100 = vector.load %arg10[%99, %c0_37, %c0_38] : memref<8x16x128xf32, #tpu.memory_space<vmem>>, vector<1x16x128xf32>
    %101 = vector.shape_cast %100 : vector<1x16x128xf32> to vector<16x128xf32>
    %cst_39 = arith.constant dense<0.000000e+00> : vector<16x128xf32>
    %102 = tpu.matmul %94, %15, %cst_39 {dimension_numbers = #tpu.dot_dimension_numbers<[1], [0], [0], [1], [0, 0, 1, 1], [], []>} : vector<16x32xf32>, vector<32x128xf32>, vector<16x128xf32> -> vector<16x128xf32>
    %103 = arith.addf %101, %102 : vector<16x128xf32>
    %cst_40 = arith.constant 5.000000e-01 : f32
    %104 = vector.broadcast %cst_40 : f32 to vector<16x128xf32>
    %105 = arith.mulf %104, %103 : vector<16x128xf32>
    %106 = math.tanh %105 : vector<16x128xf32>
    %cst_41 = arith.constant 5.000000e-01 : f32
    %107 = vector.broadcast %cst_41 : f32 to vector<16x128xf32>
    %108 = arith.mulf %107, %106 : vector<16x128xf32>
    %cst_42 = arith.constant 5.000000e-01 : f32
    %109 = vector.broadcast %cst_42 : f32 to vector<16x128xf32>
    %110 = arith.addf %108, %109 : vector<16x128xf32>
    %111 = math.tanh %103 : vector<16x128xf32>
    %112 = arith.select %14, %111, %110 : vector<16x128xi1>, vector<16x128xf32>
    %113 = vector.extract_strided_slice %112 {offsets = [0, 0], sizes = [16, 32], strides = [1, 1]} : vector<16x128xf32> to vector<16x32xf32>
    %114 = vector.extract_strided_slice %112 {offsets = [0, 32], sizes = [16, 32], strides = [1, 1]} : vector<16x128xf32> to vector<16x32xf32>
    %115 = vector.extract_strided_slice %112 {offsets = [0, 64], sizes = [16, 32], strides = [1, 1]} : vector<16x128xf32> to vector<16x32xf32>
    %116 = vector.extract_strided_slice %112 {offsets = [0, 96], sizes = [16, 32], strides = [1, 1]} : vector<16x128xf32> to vector<16x32xf32>
    %117 = arith.mulf %114, %92 : vector<16x32xf32>
    %118 = arith.mulf %113, %115 : vector<16x32xf32>
    %119 = arith.addf %117, %118 : vector<16x32xf32>
    %120 = math.tanh %119 : vector<16x32xf32>
    %121 = arith.mulf %116, %120 : vector<16x32xf32>
    %122 = arith.index_cast %c3_i32 : i32 to index
    %c0_43 = arith.constant 0 : index
    %c0_44 = arith.constant 0 : index
    %123 = vector.load %arg11[%122, %c0_43, %c0_44] : memref<8x16x32xf32, #tpu.memory_space<vmem>>, vector<1x16x32xf32>
    %124 = vector.shape_cast %123 : vector<1x16x32xf32> to vector<16x32xf32>
    %125 = vector.shape_cast %121 : vector<16x32xf32> to vector<1x16x32xf32>
    tpu.vector_store %arg11[%122, %c0_43, %c0_44], %125 {strides = array<i32>} : memref<8x16x32xf32, #tpu.memory_space<vmem>>, vector<1x16x32xf32>,
    %c4_i32 = arith.constant 4 : i32
    %126 = arith.index_cast %c4_i32 : i32 to index
    %c0_45 = arith.constant 0 : index
    %c0_46 = arith.constant 0 : index
    %127 = vector.load %arg10[%126, %c0_45, %c0_46] : memref<8x16x128xf32, #tpu.memory_space<vmem>>, vector<1x16x128xf32>
    %128 = vector.shape_cast %127 : vector<1x16x128xf32> to vector<16x128xf32>
    %cst_47 = arith.constant dense<0.000000e+00> : vector<16x128xf32>
    %129 = tpu.matmul %121, %15, %cst_47 {dimension_numbers = #tpu.dot_dimension_numbers<[1], [0], [0], [1], [0, 0, 1, 1], [], []>} : vector<16x32xf32>, vector<32x128xf32>, vector<16x128xf32> -> vector<16x128xf32>
    %130 = arith.addf %128, %129 : vector<16x128xf32>
    %cst_48 = arith.constant 5.000000e-01 : f32
    %131 = vector.broadcast %cst_48 : f32 to vector<16x128xf32>
    %132 = arith.mulf %131, %130 : vector<16x128xf32>
    %133 = math.tanh %132 : vector<16x128xf32>
    %cst_49 = arith.constant 5.000000e-01 : f32
    %134 = vector.broadcast %cst_49 : f32 to vector<16x128xf32>
    %135 = arith.mulf %134, %133 : vector<16x128xf32>
    %cst_50 = arith.constant 5.000000e-01 : f32
    %136 = vector.broadcast %cst_50 : f32 to vector<16x128xf32>
    %137 = arith.addf %135, %136 : vector<16x128xf32>
    %138 = math.tanh %130 : vector<16x128xf32>
    %139 = arith.select %14, %138, %137 : vector<16x128xi1>, vector<16x128xf32>
    %140 = vector.extract_strided_slice %139 {offsets = [0, 0], sizes = [16, 32], strides = [1, 1]} : vector<16x128xf32> to vector<16x32xf32>
    %141 = vector.extract_strided_slice %139 {offsets = [0, 32], sizes = [16, 32], strides = [1, 1]} : vector<16x128xf32> to vector<16x32xf32>
    %142 = vector.extract_strided_slice %139 {offsets = [0, 64], sizes = [16, 32], strides = [1, 1]} : vector<16x128xf32> to vector<16x32xf32>
    %143 = vector.extract_strided_slice %139 {offsets = [0, 96], sizes = [16, 32], strides = [1, 1]} : vector<16x128xf32> to vector<16x32xf32>
    %144 = arith.mulf %141, %119 : vector<16x32xf32>
    %145 = arith.mulf %140, %142 : vector<16x32xf32>
    %146 = arith.addf %144, %145 : vector<16x32xf32>
    %147 = math.tanh %146 : vector<16x32xf32>
    %148 = arith.mulf %143, %147 : vector<16x32xf32>
    %149 = arith.index_cast %c4_i32 : i32 to index
    %c0_51 = arith.constant 0 : index
    %c0_52 = arith.constant 0 : index
    %150 = vector.load %arg11[%149, %c0_51, %c0_52] : memref<8x16x32xf32, #tpu.memory_space<vmem>>, vector<1x16x32xf32>
    %151 = vector.shape_cast %150 : vector<1x16x32xf32> to vector<16x32xf32>
    %152 = vector.shape_cast %148 : vector<16x32xf32> to vector<1x16x32xf32>
    tpu.vector_store %arg11[%149, %c0_51, %c0_52], %152 {strides = array<i32>} : memref<8x16x32xf32, #tpu.memory_space<vmem>>, vector<1x16x32xf32>,
    %c5_i32 = arith.constant 5 : i32
    %153 = arith.index_cast %c5_i32 : i32 to index
    %c0_53 = arith.constant 0 : index
    %c0_54 = arith.constant 0 : index
    %154 = vector.load %arg10[%153, %c0_53, %c0_54] : memref<8x16x128xf32, #tpu.memory_space<vmem>>, vector<1x16x128xf32>
    %155 = vector.shape_cast %154 : vector<1x16x128xf32> to vector<16x128xf32>
    %cst_55 = arith.constant dense<0.000000e+00> : vector<16x128xf32>
    %156 = tpu.matmul %148, %15, %cst_55 {dimension_numbers = #tpu.dot_dimension_numbers<[1], [0], [0], [1], [0, 0, 1, 1], [], []>} : vector<16x32xf32>, vector<32x128xf32>, vector<16x128xf32> -> vector<16x128xf32>
    %157 = arith.addf %155, %156 : vector<16x128xf32>
    %cst_56 = arith.constant 5.000000e-01 : f32
    %158 = vector.broadcast %cst_56 : f32 to vector<16x128xf32>
    %159 = arith.mulf %158, %157 : vector<16x128xf32>
    %160 = math.tanh %159 : vector<16x128xf32>
    %cst_57 = arith.constant 5.000000e-01 : f32
    %161 = vector.broadcast %cst_57 : f32 to vector<16x128xf32>
    %162 = arith.mulf %161, %160 : vector<16x128xf32>
    %cst_58 = arith.constant 5.000000e-01 : f32
    %163 = vector.broadcast %cst_58 : f32 to vector<16x128xf32>
    %164 = arith.addf %162, %163 : vector<16x128xf32>
    %165 = math.tanh %157 : vector<16x128xf32>
    %166 = arith.select %14, %165, %164 : vector<16x128xi1>, vector<16x128xf32>
    %167 = vector.extract_strided_slice %166 {offsets = [0, 0], sizes = [16, 32], strides = [1, 1]} : vector<16x128xf32> to vector<16x32xf32>
    %168 = vector.extract_strided_slice %166 {offsets = [0, 32], sizes = [16, 32], strides = [1, 1]} : vector<16x128xf32> to vector<16x32xf32>
    %169 = vector.extract_strided_slice %166 {offsets = [0, 64], sizes = [16, 32], strides = [1, 1]} : vector<16x128xf32> to vector<16x32xf32>
    %170 = vector.extract_strided_slice %166 {offsets = [0, 96], sizes = [16, 32], strides = [1, 1]} : vector<16x128xf32> to vector<16x32xf32>
    %171 = arith.mulf %168, %146 : vector<16x32xf32>
    %172 = arith.mulf %167, %169 : vector<16x32xf32>
    %173 = arith.addf %171, %172 : vector<16x32xf32>
    %174 = math.tanh %173 : vector<16x32xf32>
    %175 = arith.mulf %170, %174 : vector<16x32xf32>
    %176 = arith.index_cast %c5_i32 : i32 to index
    %c0_59 = arith.constant 0 : index
    %c0_60 = arith.constant 0 : index
    %177 = vector.load %arg11[%176, %c0_59, %c0_60] : memref<8x16x32xf32, #tpu.memory_space<vmem>>, vector<1x16x32xf32>
    %178 = vector.shape_cast %177 : vector<1x16x32xf32> to vector<16x32xf32>
    %179 = vector.shape_cast %175 : vector<16x32xf32> to vector<1x16x32xf32>
    tpu.vector_store %arg11[%176, %c0_59, %c0_60], %179 {strides = array<i32>} : memref<8x16x32xf32, #tpu.memory_space<vmem>>, vector<1x16x32xf32>,
    %c6_i32 = arith.constant 6 : i32
    %180 = arith.index_cast %c6_i32 : i32 to index
    %c0_61 = arith.constant 0 : index
    %c0_62 = arith.constant 0 : index
    %181 = vector.load %arg10[%180, %c0_61, %c0_62] : memref<8x16x128xf32, #tpu.memory_space<vmem>>, vector<1x16x128xf32>
    %182 = vector.shape_cast %181 : vector<1x16x128xf32> to vector<16x128xf32>
    %cst_63 = arith.constant dense<0.000000e+00> : vector<16x128xf32>
    %183 = tpu.matmul %175, %15, %cst_63 {dimension_numbers = #tpu.dot_dimension_numbers<[1], [0], [0], [1], [0, 0, 1, 1], [], []>} : vector<16x32xf32>, vector<32x128xf32>, vector<16x128xf32> -> vector<16x128xf32>
    %184 = arith.addf %182, %183 : vector<16x128xf32>
    %cst_64 = arith.constant 5.000000e-01 : f32
    %185 = vector.broadcast %cst_64 : f32 to vector<16x128xf32>
    %186 = arith.mulf %185, %184 : vector<16x128xf32>
    %187 = math.tanh %186 : vector<16x128xf32>
    %cst_65 = arith.constant 5.000000e-01 : f32
    %188 = vector.broadcast %cst_65 : f32 to vector<16x128xf32>
    %189 = arith.mulf %188, %187 : vector<16x128xf32>
    %cst_66 = arith.constant 5.000000e-01 : f32
    %190 = vector.broadcast %cst_66 : f32 to vector<16x128xf32>
    %191 = arith.addf %189, %190 : vector<16x128xf32>
    %192 = math.tanh %184 : vector<16x128xf32>
    %193 = arith.select %14, %192, %191 : vector<16x128xi1>, vector<16x128xf32>
    %194 = vector.extract_strided_slice %193 {offsets = [0, 0], sizes = [16, 32], strides = [1, 1]} : vector<16x128xf32> to vector<16x32xf32>
    %195 = vector.extract_strided_slice %193 {offsets = [0, 32], sizes = [16, 32], strides = [1, 1]} : vector<16x128xf32> to vector<16x32xf32>
    %196 = vector.extract_strided_slice %193 {offsets = [0, 64], sizes = [16, 32], strides = [1, 1]} : vector<16x128xf32> to vector<16x32xf32>
    %197 = vector.extract_strided_slice %193 {offsets = [0, 96], sizes = [16, 32], strides = [1, 1]} : vector<16x128xf32> to vector<16x32xf32>
    %198 = arith.mulf %195, %173 : vector<16x32xf32>
    %199 = arith.mulf %194, %196 : vector<16x32xf32>
    %200 = arith.addf %198, %199 : vector<16x32xf32>
    %201 = math.tanh %200 : vector<16x32xf32>
    %202 = arith.mulf %197, %201 : vector<16x32xf32>
    %203 = arith.index_cast %c6_i32 : i32 to index
    %c0_67 = arith.constant 0 : index
    %c0_68 = arith.constant 0 : index
    %204 = vector.load %arg11[%203, %c0_67, %c0_68] : memref<8x16x32xf32, #tpu.memory_space<vmem>>, vector<1x16x32xf32>
    %205 = vector.shape_cast %204 : vector<1x16x32xf32> to vector<16x32xf32>
    %206 = vector.shape_cast %202 : vector<16x32xf32> to vector<1x16x32xf32>
    tpu.vector_store %arg11[%203, %c0_67, %c0_68], %206 {strides = array<i32>} : memref<8x16x32xf32, #tpu.memory_space<vmem>>, vector<1x16x32xf32>,
    %c7_i32 = arith.constant 7 : i32
    %207 = arith.index_cast %c7_i32 : i32 to index
    %c0_69 = arith.constant 0 : index
    %c0_70 = arith.constant 0 : index
    %208 = vector.load %arg10[%207, %c0_69, %c0_70] : memref<8x16x128xf32, #tpu.memory_space<vmem>>, vector<1x16x128xf32>
    %209 = vector.shape_cast %208 : vector<1x16x128xf32> to vector<16x128xf32>
    %cst_71 = arith.constant dense<0.000000e+00> : vector<16x128xf32>
    %210 = tpu.matmul %202, %15, %cst_71 {dimension_numbers = #tpu.dot_dimension_numbers<[1], [0], [0], [1], [0, 0, 1, 1], [], []>} : vector<16x32xf32>, vector<32x128xf32>, vector<16x128xf32> -> vector<16x128xf32>
    %211 = arith.addf %209, %210 : vector<16x128xf32>
    %cst_72 = arith.constant 5.000000e-01 : f32
    %212 = vector.broadcast %cst_72 : f32 to vector<16x128xf32>
    %213 = arith.mulf %212, %211 : vector<16x128xf32>
    %214 = math.tanh %213 : vector<16x128xf32>
    %cst_73 = arith.constant 5.000000e-01 : f32
    %215 = vector.broadcast %cst_73 : f32 to vector<16x128xf32>
    %216 = arith.mulf %215, %214 : vector<16x128xf32>
    %cst_74 = arith.constant 5.000000e-01 : f32
    %217 = vector.broadcast %cst_74 : f32 to vector<16x128xf32>
    %218 = arith.addf %216, %217 : vector<16x128xf32>
    %219 = math.tanh %211 : vector<16x128xf32>
    %220 = arith.select %14, %219, %218 : vector<16x128xi1>, vector<16x128xf32>
    %221 = vector.extract_strided_slice %220 {offsets = [0, 0], sizes = [16, 32], strides = [1, 1]} : vector<16x128xf32> to vector<16x32xf32>
    %222 = vector.extract_strided_slice %220 {offsets = [0, 32], sizes = [16, 32], strides = [1, 1]} : vector<16x128xf32> to vector<16x32xf32>
    %223 = vector.extract_strided_slice %220 {offsets = [0, 64], sizes = [16, 32], strides = [1, 1]} : vector<16x128xf32> to vector<16x32xf32>
    %224 = vector.extract_strided_slice %220 {offsets = [0, 96], sizes = [16, 32], strides = [1, 1]} : vector<16x128xf32> to vector<16x32xf32>
    %225 = arith.mulf %222, %200 : vector<16x32xf32>
    %226 = arith.mulf %221, %223 : vector<16x32xf32>
    %227 = arith.addf %225, %226 : vector<16x32xf32>
    %228 = math.tanh %227 : vector<16x32xf32>
    %229 = arith.mulf %224, %228 : vector<16x32xf32>
    %230 = arith.index_cast %c7_i32 : i32 to index
    %c0_75 = arith.constant 0 : index
    %c0_76 = arith.constant 0 : index
    %231 = vector.load %arg11[%230, %c0_75, %c0_76] : memref<8x16x32xf32, #tpu.memory_space<vmem>>, vector<1x16x32xf32>
    %232 = vector.shape_cast %231 : vector<1x16x32xf32> to vector<16x32xf32>
    %233 = vector.shape_cast %229 : vector<16x32xf32> to vector<1x16x32xf32>
    tpu.vector_store %arg11[%230, %c0_75, %c0_76], %233 {strides = array<i32>} : memref<8x16x32xf32, #tpu.memory_space<vmem>>, vector<1x16x32xf32>,
    %c8_i32 = arith.constant 8 : i32
    %c0_77 = arith.constant 0 : index
    %c0_78 = arith.constant 0 : index
    %c0_79 = arith.constant 0 : index
    %234 = vector.load %arg11[%c0_77, %c0_78, %c0_79] : memref<8x16x32xf32, #tpu.memory_space<vmem>>, vector<8x16x32xf32>
    %235 = vector.shape_cast %234 : vector<8x16x32xf32> to vector<128x32xf32>
    %c0_80 = arith.constant 0 : index
    %c0_81 = arith.constant 0 : index
    %236 = vector.load %arg5[%c0_80, %c0_81] : memref<32x4xf32, #tpu.memory_space<vmem>>, vector<32x4xf32>
    %cst_82 = arith.constant dense<0.000000e+00> : vector<128x4xf32>
    %237 = tpu.matmul %235, %236, %cst_82 {dimension_numbers = #tpu.dot_dimension_numbers<[1], [0], [0], [1], [0, 0, 1, 1], [], []>} : vector<128x32xf32>, vector<32x4xf32>, vector<128x4xf32> -> vector<128x4xf32>
    %c0_83 = arith.constant 0 : index
    %c0_84 = arith.constant 0 : index
    %238 = vector.load %arg6[%c0_83, %c0_84] : memref<1x4xf32, #tpu.memory_space<vmem>>, vector<1x4xf32>
    %239 = vector.broadcast %238 : vector<1x4xf32> to vector<128x4xf32>
    %240 = arith.addf %237, %239 : vector<128x4xf32>
    %c0_85 = arith.constant 0 : index
    %c0_86 = arith.constant 0 : index
    %241 = vector.load %arg7[%c0_85, %c0_86] : memref<4x4xf32, #tpu.memory_space<vmem>>, vector<4x4xf32>
    %cst_87 = arith.constant dense<0.000000e+00> : vector<128x4xf32>
    %242 = tpu.matmul %240, %241, %cst_87 {dimension_numbers = #tpu.dot_dimension_numbers<[1], [0], [0], [1], [0, 0, 1, 1], [], []>} : vector<128x4xf32>, vector<4x4xf32>, vector<128x4xf32> -> vector<128x4xf32>
    %c0_88 = arith.constant 0 : index
    %c0_89 = arith.constant 0 : index
    %243 = vector.load %arg8[%c0_88, %c0_89] : memref<1x4xf32, #tpu.memory_space<vmem>>, vector<1x4xf32>
    %244 = vector.broadcast %243 : vector<1x4xf32> to vector<128x4xf32>
    %245 = arith.addf %242, %244 : vector<128x4xf32>
    %cst_90 = arith.constant 0.000000e+00 : f32
    %246 = vector.broadcast %cst_90 : f32 to vector<128x4xf32>
    %247 = arith.maximumf %245, %246 : vector<128x4xf32>
    %248 = arith.addf %247, %240 : vector<128x4xf32>
    %249 = vector.shape_cast %248 : vector<128x4xf32> to vector<8x16x4xf32>
    %c0_91 = arith.constant 0 : index
    %c0_92 = arith.constant 0 : index
    %c0_93 = arith.constant 0 : index
    %250 = vector.load %arg9[%c0_91, %c0_92, %c0_93] : memref<8x16x4xf32, #tpu.memory_space<vmem>>, vector<8x16x4xf32>
    tpu.vector_store %arg9[%c0_91, %c0_92, %c0_93], %249 {strides = array<i32>} : memref<8x16x4xf32, #tpu.memory_space<vmem>>, vector<8x16x4xf32>,
    return
  }
  func.func @transform_0(%arg0: i32) -> (i32, i32, i32) {
    %c0_i32 = arith.constant 0 : i32
    %c0_i32_0 = arith.constant 0 : i32
    %c0_i32_1 = arith.constant 0 : i32
    return %c0_i32, %arg0, %c0_i32_0 : i32, i32, i32
  }
  func.func @transform_1(%arg0: i32) -> (i32, i32) {
    %c0_i32 = arith.constant 0 : i32
    %c0_i32_0 = arith.constant 0 : i32
    %c0_i32_1 = arith.constant 0 : i32
    return %c0_i32, %c0_i32_0 : i32, i32
  }
  func.func @transform_2(%arg0: i32) -> (i32, i32) {
    %c0_i32 = arith.constant 0 : i32
    %c0_i32_0 = arith.constant 0 : i32
    %c0_i32_1 = arith.constant 0 : i32
    return %c0_i32, %c0_i32_0 : i32, i32
  }
  func.func @transform_3(%arg0: i32) -> (i32, i32) {
    %c0_i32 = arith.constant 0 : i32
    %c0_i32_0 = arith.constant 0 : i32
    %c0_i32_1 = arith.constant 0 : i32
    return %c0_i32, %c0_i32_0 : i32, i32
  }
  func.func @transform_4(%arg0: i32) -> (i32, i32) {
    %c0_i32 = arith.constant 0 : i32
    %c0_i32_0 = arith.constant 0 : i32
    %c0_i32_1 = arith.constant 0 : i32
    return %c0_i32, %c0_i32_0 : i32, i32
  }
  func.func @transform_5(%arg0: i32) -> (i32, i32) {
    %c0_i32 = arith.constant 0 : i32
    %c0_i32_0 = arith.constant 0 : i32
    %c0_i32_1 = arith.constant 0 : i32
    return %c0_i32, %c0_i32_0 : i32, i32
  }
  func.func @transform_6(%arg0: i32) -> (i32, i32) {
    %c0_i32 = arith.constant 0 : i32
    %c0_i32_0 = arith.constant 0 : i32
    %c0_i32_1 = arith.constant 0 : i32
    return %c0_i32, %c0_i32_0 : i32, i32
  }
  func.func @transform_7(%arg0: i32) -> (i32, i32) {
    %c0_i32 = arith.constant 0 : i32
    %c0_i32_0 = arith.constant 0 : i32
    %c0_i32_1 = arith.constant 0 : i32
    return %c0_i32, %c0_i32_0 : i32, i32
  }
  func.func @transform_8(%arg0: i32) -> (i32, i32, i32) {
    %c0_i32 = arith.constant 0 : i32
    %c0_i32_0 = arith.constant 0 : i32
    %c0_i32_1 = arith.constant 0 : i32
    return %c0_i32, %arg0, %c0_i32_0 : i32, i32, i32
  }
}

</mosaic_0001>

<llo_original>
// kernel: tpu_custom_call.1
$region0: #{tpu_custom_call.1}
  #allocation0 [shape = 'u32[]', space=smem, size = 0x4, offset = 0x4, fixed_abs, tag = 'smem constant byte address 0x4 - core index']
  #allocation1 [shape = 'u32[144,128]{1,0:T(1,128)}', space=vmem, size = 0x12000, scoped, tag = 'internal scratch']
  #allocation2 [shape = 'f32[8,16,128]{2,1,0:T(8,128)}', space=vmem, size = 0x10000, scoped, tag = 'scratch operand']
  #allocation3 [shape = 'f32[8,16,32]{2,1,0:T(8,128)}', space=vmem, size = 0x10000, scoped, tag = 'scratch operand']
  %s0 = inlined_call_operand.vmem [shape: f32[8,32,4], index: 0, kind: input, shape index: {}]
  %s1 = inlined_call_operand.vmem [shape: f32[4,128], index: 1, kind: input, shape index: {}]
  %s2 = inlined_call_operand.vmem [shape: f32[32,128], index: 2, kind: input, shape index: {}]
  %s3 = inlined_call_operand.vmem [shape: f32[1,128], index: 3, kind: input, shape index: {}]
  %s4 = inlined_call_operand.vmem [shape: f32[32,4], index: 4, kind: input, shape index: {}]
  %s5 = inlined_call_operand.vmem [shape: f32[1,4], index: 5, kind: input, shape index: {}]
  %s6 = inlined_call_operand.vmem [shape: f32[4,4], index: 6, kind: input, shape index: {}]
  %s7 = inlined_call_operand.vmem [shape: f32[1,4], index: 7, kind: input, shape index: {}]
  %s8 = inlined_call_operand.vmem [shape: f32[8,32,4], index: 8, kind: output, shape index: {}]
  %s9 = sld [smem:[#allocation0]]
  $region137: #{tpu_custom_call.1} parent=0
    _
  %s11 = ssub.s32 1, %s9
  %s12 = scalar_select 0, %s11, %s9
  $region1: #{tpu_custom_call.1} parent=0
    #allocation4 [shape = 'u8[131072]{0}', space=vmem, size = 0x20000, scoped, tag = 'input window, operand 0']
    #allocation5 [shape = 'u8[131072]{0}', space=vmem, size = 0x20000, scoped, tag = 'output window, operand 0']
    loop: start=0, step=1, limit=4
    $region2: #{tpu_custom_call.1} parent=1 // loop_pre_header
      _
    $region3: #{tpu_custom_call.1} parent=1 // loop_header
      %s14 = sphi 0, %s18
      %p15 = scmp.ge.s32.totalorder %s14, 4
      %s24 = sphi 0, %s26
      %s27 = sphi 0, %s24
      %s28 = sphi 0, %s27
      %s44 = sphi 0, %s28
      %s48 = sphi 0, %s48
      %s50 = sphi 0, %s48
      %s51 = sphi 0, %s50
      %s65 = sphi 0, %s51
      %s69 = sphi 0, %s69
      %s71 = sphi 0, %s69
      %s72 = sphi 0, %s71
      %s86 = sphi 0, %s72
      %s90 = sphi 0, %s90
      %s92 = sphi 0, %s90
      %s93 = sphi 0, %s92
      %s107 = sphi 0, %s93
      %s111 = sphi 0, %s111
      %s113 = sphi 0, %s111
      %s114 = sphi 0, %s113
      %s128 = sphi 0, %s114
      %s132 = sphi 0, %s132
      %s134 = sphi 0, %s132
      %s135 = sphi 0, %s134
      %s149 = sphi 0, %s135
      %s153 = sphi 0, %s153
      %s155 = sphi 0, %s153
      %s156 = sphi 0, %s155
      %s170 = sphi 0, %s156
      %s174 = sphi 0, %s174
      %s176 = sphi 0, %s174
      %s177 = sphi 0, %s176
      %s191 = sphi 0, %s177
      %s197 = sphi 0, %s199
      %s200 = sphi 0, %s197
      %s201 = sphi 0, %s200
      %s217 = sphi 0, %s201
    $region4: #{tpu_custom_call.1} parent=1 // loop_header_branch
      %17 = sbr.rel (%p15) target = $region8
    $region5: #{tpu_custom_call.1} parent=1 // loop_body
      %s19 = ssub.s32 %s14, 1
      %s20 = ssub.s32 %s14, 2
      %s21 = sadd.s32 %s14, 1
      %s22 = ssub.s32 %s14, %s21
      %p23 = scmp.eq.s32.totalorder %s22, 0
      %s25 = sadd.s32 %s24, 1
      %s26 = scalar_select %p23, %s24, %s25
      %p29 = pneg %p23
      %p30 = scmp.eq.s32.totalorder %s14, 1
      %p31 = por %p29, %p30
      %p32 = scmp.ne.s32.totalorder %s24, %s27
      %p33 = scmp.eq.s32.totalorder %s14, 0
      %p34 = por %p32, %p33
      %p35 = scmp.ne.s32.totalorder %s24, %s27
      %p36 = scmp.eq.s32.totalorder %s19, 1
      %p37 = por %p35, %p36
      %p38 = scmp.ne.s32.totalorder %s27, %s28
      %p39 = scmp.eq.s32.totalorder %s19, 0
      %p40 = por %p38, %p39
      %p41 = scmp.ne.s32.totalorder %s27, %s28
      %p42 = scmp.eq.s32.totalorder %s20, 1
      %p43 = por %p41, %p42
      %p45 = scmp.ne.s32.totalorder %s28, %s44
      %p46 = scmp.eq.s32.totalorder %s20, 0
      %p47 = por %p45, %p46
      %s49 = sadd.s32 %s48, 1
      %p52 = scmp.eq.s32.totalorder %s14, 1
      %p53 = scmp.ne.s32.totalorder %s48, %s50
      %p54 = scmp.eq.s32.totalorder %s14, 0
      %p55 = por %p53, %p54
      %p56 = scmp.ne.s32.totalorder %s48, %s50
      %p57 = scmp.eq.s32.totalorder %s19, 1
      %p58 = por %p56, %p57
      %p59 = scmp.ne.s32.totalorder %s50, %s51
      %p60 = scmp.eq.s32.totalorder %s19, 0
      %p61 = por %p59, %p60
      %p62 = scmp.ne.s32.totalorder %s50, %s51
      %p63 = scmp.eq.s32.totalorder %s20, 1
      %p64 = por %p62, %p63
      %p66 = scmp.ne.s32.totalorder %s51, %s65
      %p67 = scmp.eq.s32.totalorder %s20, 0
      %p68 = por %p66, %p67
      %s70 = sadd.s32 %s69, 1
      %p73 = scmp.eq.s32.totalorder %s14, 1
      %p74 = scmp.ne.s32.totalorder %s69, %s71
      %p75 = scmp.eq.s32.totalorder %s14, 0
      %p76 = por %p74, %p75
      %p77 = scmp.ne.s32.totalorder %s69, %s71
      %p78 = scmp.eq.s32.totalorder %s19, 1
      %p79 = por %p77, %p78
      %p80 = scmp.ne.s32.totalorder %s71, %s72
      %p81 = scmp.eq.s32.totalorder %s19, 0
      %p82 = por %p80, %p81
      %p83 = scmp.ne.s32.totalorder %s71, %s72
      %p84 = scmp.eq.s32.totalorder %s20, 1
      %p85 = por %p83, %p84
      %p87 = scmp.ne.s32.totalorder %s72, %s86
      %p88 = scmp.eq.s32.totalorder %s20, 0
      %p89 = por %p87, %p88
      %s91 = sadd.s32 %s90, 1
      %p94 = scmp.eq.s32.totalorder %s14, 1
      %p95 = scmp.ne.s32.totalorder %s90, %s92
      %p96 = scmp.eq.s32.totalorder %s14, 0
      %p97 = por %p95, %p96
      %p98 = scmp.ne.s32.totalorder %s90, %s92
      %p99 = scmp.eq.s32.totalorder %s19, 1
      %p100 = por %p98, %p99
      %p101 = scmp.ne.s32.totalorder %s92, %s93
      %p102 = scmp.eq.s32.totalorder %s19, 0
      %p103 = por %p101, %p102
      %p104 = scmp.ne.s32.totalorder %s92, %s93
      %p105 = scmp.eq.s32.totalorder %s20, 1
      %p106 = por %p104, %p105
      %p108 = scmp.ne.s32.totalorder %s93, %s107
      %p109 = scmp.eq.s32.totalorder %s20, 0
      %p110 = por %p108, %p109
      %s112 = sadd.s32 %s111, 1
      %p115 = scmp.eq.s32.totalorder %s14, 1
      %p116 = scmp.ne.s32.totalorder %s111, %s113
      %p117 = scmp.eq.s32.totalorder %s14, 0
      %p118 = por %p116, %p117
      %p119 = scmp.ne.s32.totalorder %s111, %s113
      %p120 = scmp.eq.s32.totalorder %s19, 1
      %p121 = por %p119, %p120
      %p122 = scmp.ne.s32.totalorder %s113, %s114
      %p123 = scmp.eq.s32.totalorder %s19, 0
      %p124 = por %p122, %p123
      %p125 = scmp.ne.s32.totalorder %s113, %s114
      %p126 = scmp.eq.s32.totalorder %s20, 1
      %p127 = por %p125, %p126
      %p129 = scmp.ne.s32.totalorder %s114, %s128
      %p130 = scmp.eq.s32.totalorder %s20, 0
      %p131 = por %p129, %p130
      %s133 = sadd.s32 %s132, 1
      %p136 = scmp.eq.s32.totalorder %s14, 1
      %p137 = scmp.ne.s32.totalorder %s132, %s134
      %p138 = scmp.eq.s32.totalorder %s14, 0
      %p139 = por %p137, %p138
      %p140 = scmp.ne.s32.totalorder %s132, %s134
      %p141 = scmp.eq.s32.totalorder %s19, 1
      %p142 = por %p140, %p141
      %p143 = scmp.ne.s32.totalorder %s134, %s135
      %p144 = scmp.eq.s32.totalorder %s19, 0
      %p145 = por %p143, %p144
      %p146 = scmp.ne.s32.totalorder %s134, %s135
      %p147 = scmp.eq.s32.totalorder %s20, 1
      %p148 = por %p146, %p147
      %p150 = scmp.ne.s32.totalorder %s135, %s149
      %p151 = scmp.eq.s32.totalorder %s20, 0
      %p152 = por %p150, %p151
      %s154 = sadd.s32 %s153, 1
      %p157 = scmp.eq.s32.totalorder %s14, 1
      %p158 = scmp.ne.s32.totalorder %s153, %s155
      %p159 = scmp.eq.s32.totalorder %s14, 0
      %p160 = por %p158, %p159
      %p161 = scmp.ne.s32.totalorder %s153, %s155
      %p162 = scmp.eq.s32.totalorder %s19, 1
      %p163 = por %p161, %p162
      %p164 = scmp.ne.s32.totalorder %s155, %s156
      %p165 = scmp.eq.s32.totalorder %s19, 0
      %p166 = por %p164, %p165
      %p167 = scmp.ne.s32.totalorder %s155, %s156
      %p168 = scmp.eq.s32.totalorder %s20, 1
      %p169 = por %p167, %p168
      %p171 = scmp.ne.s32.totalorder %s156, %s170
      %p172 = scmp.eq.s32.totalorder %s20, 0
      %p173 = por %p171, %p172
      %s175 = sadd.s32 %s174, 1
      %p178 = scmp.eq.s32.totalorder %s14, 1
      %p179 = scmp.ne.s32.totalorder %s174, %s176
      %p180 = scmp.eq.s32.totalorder %s14, 0
      %p181 = por %p179, %p180
      %p182 = scmp.ne.s32.totalorder %s174, %s176
      %p183 = scmp.eq.s32.totalorder %s19, 1
      %p184 = por %p182, %p183
      %p185 = scmp.ne.s32.totalorder %s176, %s177
      %p186 = scmp.eq.s32.totalorder %s19, 0
      %p187 = por %p185, %p186
      %p188 = scmp.ne.s32.totalorder %s176, %s177
      %p189 = scmp.eq.s32.totalorder %s20, 1
      %p190 = por %p188, %p189
      %p192 = scmp.ne.s32.totalorder %s177, %s191
      %p193 = scmp.eq.s32.totalorder %s20, 0
      %p194 = por %p192, %p193
      %s195 = ssub.s32 %s14, %s21
      %p196 = scmp.eq.s32.totalorder %s195, 0
      %s198 = sadd.s32 %s197, 1
      %s199 = scalar_select %p196, %s197, %s198
      %p202 = pneg %p196
      %p203 = scmp.eq.s32.totalorder %s14, 1
      %p204 = por %p202, %p203
      %p205 = scmp.ne.s32.totalorder %s197, %s200
      %p206 = scmp.eq.s32.totalorder %s14, 0
      %p207 = por %p205, %p206
      %p208 = scmp.ne.s32.totalorder %s197, %s200
      %p209 = scmp.eq.s32.totalorder %s19, 1
      %p210 = por %p208, %p209
      %p211 = scmp.ne.s32.totalorder %s200, %s201
      %p212 = scmp.eq.s32.totalorder %s19, 0
      %p213 = por %p211, %p212
      %p214 = scmp.ne.s32.totalorder %s200, %s201
      %p215 = scmp.eq.s32.totalorder %s20, 1
      %p216 = por %p214, %p215
      %p218 = scmp.ne.s32.totalorder %s201, %s217
      %p219 = scmp.eq.s32.totalorder %s20, 0
      %p220 = por %p218, %p219
      %p221 = scmp.le.s32.totalorder 1, %s14
      %p222 = scmp.lt.s32.totalorder %s14, 3
      %p223 = pnand %p221, %p222
      %p224 = pneg %p223
      // Predicated region
      $region9: #{tpu_custom_call.1} parent=5 // pred_check
        _
      $region10: #{tpu_custom_call.1} parent=5 // pred_check_branch
        %226 = sbr.rel (%p223) target = $region12
      $region11: #{tpu_custom_call.1} parent=5 // pred_region
        %s227 = ssub.s32 %s14, 1
        // Predicated region
        $region13: #{tpu_custom_call.1} parent=11 // pred_check
          %p228 = pneg %p61
        $region14: #{tpu_custom_call.1} parent=11 // pred_check_branch
          %230 = sbr.rel (%p228) target = $region16
        $region15: #{tpu_custom_call.1} parent=11 // pred_region
          _
        $region16: #{tpu_custom_call.1} parent=11 // pred_fallthru
          _
        // Predicated region
        $region17: #{tpu_custom_call.1} parent=11 // pred_check
          %p231 = pneg %p82
        $region18: #{tpu_custom_call.1} parent=11 // pred_check_branch
          %233 = sbr.rel (%p231) target = $region20
        $region19: #{tpu_custom_call.1} parent=11 // pred_region
          _
        $region20: #{tpu_custom_call.1} parent=11 // pred_fallthru
          _
        // Predicated region
        $region21: #{tpu_custom_call.1} parent=11 // pred_check
          %p234 = pneg %p103
        $region22: #{tpu_custom_call.1} parent=11 // pred_check_branch
          %236 = sbr.rel (%p234) target = $region24
        $region23: #{tpu_custom_call.1} parent=11 // pred_region
          _
        $region24: #{tpu_custom_call.1} parent=11 // pred_fallthru
          _
        // Predicated region
        $region25: #{tpu_custom_call.1} parent=11 // pred_check
          %p237 = pneg %p124
        $region26: #{tpu_custom_call.1} parent=11 // pred_check_branch
          %239 = sbr.rel (%p237) target = $region28
        $region27: #{tpu_custom_call.1} parent=11 // pred_region
          _
        $region28: #{tpu_custom_call.1} parent=11 // pred_fallthru
          _
        // Predicated region
        $region29: #{tpu_custom_call.1} parent=11 // pred_check
          %p240 = pneg %p145
        $region30: #{tpu_custom_call.1} parent=11 // pred_check_branch
          %242 = sbr.rel (%p240) target = $region32
        $region31: #{tpu_custom_call.1} parent=11 // pred_region
          _
        $region32: #{tpu_custom_call.1} parent=11 // pred_fallthru
          _
        // Predicated region
        $region33: #{tpu_custom_call.1} parent=11 // pred_check
          %p243 = pneg %p166
        $region34: #{tpu_custom_call.1} parent=11 // pred_check_branch
          %245 = sbr.rel (%p243) target = $region36
        $region35: #{tpu_custom_call.1} parent=11 // pred_region
          _
        $region36: #{tpu_custom_call.1} parent=11 // pred_fallthru
          _
        // Predicated region
        $region37: #{tpu_custom_call.1} parent=11 // pred_check
          %p246 = pneg %p187
        $region38: #{tpu_custom_call.1} parent=11 // pred_check_branch
          %248 = sbr.rel (%p246) target = $region40
        $region39: #{tpu_custom_call.1} parent=11 // pred_region
          _
        $region40: #{tpu_custom_call.1} parent=11 // pred_fallthru
          _
      $region12: #{tpu_custom_call.1} parent=5 // pred_fallthru
        _
      %p249 = scmp.lt.s32.totalorder %s14, 2
      // Predicated region
      $region41: #{tpu_custom_call.1} parent=5 // pred_check
        %p250 = pneg %p249
      $region42: #{tpu_custom_call.1} parent=5 // pred_check_branch
        %252 = sbr.rel (%p250) target = $region44
      $region43: #{tpu_custom_call.1} parent=5 // pred_region
        // Predicated region
        $region45: #{tpu_custom_call.1} parent=43 // pred_check
          %p253 = pneg %p34
        $region46: #{tpu_custom_call.1} parent=43 // pred_check_branch
          %255 = sbr.rel (%p253) target = $region48
        $region47: #{tpu_custom_call.1} parent=43 // pred_region
          %s256 = sand.u32 %s24, 1
          %s257 = sand.u32 %s24, 1
          %s258 = smul.addr %s257, 128
          %s259 = scalar_lea.vmem [#allocation4], %s258
          %s260 = smul.u32 2, %s14
          %s261 = smul.addr %s260, 8
          %s262 = scalar_lea.vmem %s0, %s261
          // Predicated region
          $region49: #{tpu_custom_call.1} parent=47 // pred_check
            _
          $region50: #{tpu_custom_call.1} parent=47 // pred_check_branch
            %264 = sbr.rel (0) target = $region52
          $region51: #{tpu_custom_call.1} parent=47 // pred_region
            // Predicated region
            $region53: #{tpu_custom_call.1} parent=51 // pred_check
              _
            $region54: #{tpu_custom_call.1} parent=51 // pred_check_branch
              %266 = sbr.rel (0) target = $region56
            $region55: #{tpu_custom_call.1} parent=51 // pred_region
              // Predicated region
              $region68: #{tpu_custom_call.1} parent=55 // pred_check
                _
              $region69: #{tpu_custom_call.1} parent=55 // pred_check_branch
                %312 = sbr.rel (0) target = $region71
              $region70: #{tpu_custom_call.1} parent=55 // pred_region
                loop: start=0, step=1, limit=1
                $region72: #{tpu_custom_call.1} parent=70 // loop_pre_header
                  _
                $region73: #{tpu_custom_call.1} parent=70 // loop_header
                  %s314 = sphi 0, %s318
                  %p315 = scmp.ge.s32.totalorder %s314, 1
                  %s319 = sphi %s262, %s262
                  %s320 = sphi %s259, %s259
                $region74: #{tpu_custom_call.1} parent=70 // loop_header_branch
                  %317 = sbr.rel (%p315) target = $region78
                $region75: #{tpu_custom_call.1} parent=70 // loop_body
                  %v321 = vld [vmem:[%s319] sm:$0xff]
                  %322 = vst [vmem:[%s320] sm:$0xff] %v321
                  %v323 = vld [vmem:[%s319 + $0x8] sm:$0xff]
                  %324 = vst [vmem:[%s320 + $0x8] sm:$0xff] %v323
                  %v325 = vld [vmem:[%s319 + $0x20] sm:$0xff]
                  %326 = vst [vmem:[%s320 + $0x10] sm:$0xff] %v325
                  %v327 = vld [vmem:[%s319 + $0x28] sm:$0xff]
                  %328 = vst [vmem:[%s320 + $0x18] sm:$0xff] %v327
                  %v329 = vld [vmem:[%s319 + $0x40] sm:$0xff]
                  %330 = vst [vmem:[%s320 + $0x20] sm:$0xff] %v329
                  %v331 = vld [vmem:[%s319 + $0x48] sm:$0xff]
                  %332 = vst [vmem:[%s320 + $0x28] sm:$0xff] %v331
                  %v333 = vld [vmem:[%s319 + $0x60] sm:$0xff]
                  %334 = vst [vmem:[%s320 + $0x30] sm:$0xff] %v333
                  %v335 = vld [vmem:[%s319 + $0x68] sm:$0xff]
                  %336 = vst [vmem:[%s320 + $0x38] sm:$0xff] %v335
                  %v337 = vld [vmem:[%s319 + $0x80] sm:$0xff]
                  %338 = vst [vmem:[%s320 + $0x40] sm:$0xff] %v337
                  %v339 = vld [vmem:[%s319 + $0x88] sm:$0xff]
                  %340 = vst [vmem:[%s320 + $0x48] sm:$0xff] %v339
                  %v341 = vld [vmem:[%s319 + $0xa0] sm:$0xff]
                  %342 = vst [vmem:[%s320 + $0x50] sm:$0xff] %v341
                  %v343 = vld [vmem:[%s319 + $0xa8] sm:$0xff]
                  %344 = vst [vmem:[%s320 + $0x58] sm:$0xff] %v343
                  %v345 = vld [vmem:[%s319 + $0xc0] sm:$0xff]
                  %346 = vst [vmem:[%s320 + $0x60] sm:$0xff] %v345
                  %v347 = vld [vmem:[%s319 + $0xc8] sm:$0xff]
                  %348 = vst [vmem:[%s320 + $0x68] sm:$0xff] %v347
                  %v349 = vld [vmem:[%s319 + $0xe0] sm:$0xff]
                  %350 = vst [vmem:[%s320 + $0x70] sm:$0xff] %v349
                  %v351 = vld [vmem:[%s319 + $0xe8] sm:$0xff]
                  %352 = vst [vmem:[%s320 + $0x78] sm:$0xff] %v351
                $region76: #{tpu_custom_call.1} parent=70 // loop_footer
                  %s318 = sadd.s32 1, %s314
                $region77: #{tpu_custom_call.1} parent=70 // loop_footer_branch
                  %313 = sbr.rel target = $region73
                $region78: #{tpu_custom_call.1} parent=70 // loop_exit
                  _
              $region71: #{tpu_custom_call.1} parent=55 // pred_fallthru
                _
              // Predicated region
              $region79: #{tpu_custom_call.1} parent=55 // pred_check
                _
              $region80: #{tpu_custom_call.1} parent=55 // pred_check_branch
                %354 = sbr.rel target = $region82
              $region81: #{tpu_custom_call.1} parent=55 // pred_region
                _
              $region82: #{tpu_custom_call.1} parent=55 // pred_fallthru
                _
            $region56: #{tpu_custom_call.1} parent=51 // pred_fallthru
              _
            // Predicated region
            $region57: #{tpu_custom_call.1} parent=51 // pred_check
              _
            $region58: #{tpu_custom_call.1} parent=51 // pred_check_branch
              %268 = sbr.rel target = $region60
            $region59: #{tpu_custom_call.1} parent=51 // pred_region
              %s270 = ssub.s32 256, 1
              loop: start=0, step=1, limit=1
              $region61: #{tpu_custom_call.1} parent=59 // loop_pre_header
                _
              $region62: #{tpu_custom_call.1} parent=59 // loop_header
                %s272 = sphi 0, %s276
                %p273 = scmp.ge.s32.totalorder %s272, 1
                %s277 = sphi %s262, %s262
                %s278 = sphi %s259, %s259
              $region63: #{tpu_custom_call.1} parent=59 // loop_header_branch
                %275 = sbr.rel (%p273) target = $region67
              $region64: #{tpu_custom_call.1} parent=59 // loop_body
                %v279 = vld [vmem:[%s277] sm:%s270]
                %280 = vst [vmem:[%s278] sm:%s270] %v279
                %v281 = vld [vmem:[%s277 + $0x8] sm:%s270]
                %282 = vst [vmem:[%s278 + $0x8] sm:%s270] %v281
                %v283 = vld [vmem:[%s277 + $0x20] sm:%s270]
                %284 = vst [vmem:[%s278 + $0x10] sm:%s270] %v283
                %v285 = vld [vmem:[%s277 + $0x28] sm:%s270]
                %286 = vst [vmem:[%s278 + $0x18] sm:%s270] %v285
                %v287 = vld [vmem:[%s277 + $0x40] sm:%s270]
                %288 = vst [vmem:[%s278 + $0x20] sm:%s270] %v287
                %v289 = vld [vmem:[%s277 + $0x48] sm:%s270]
                %290 = vst [vmem:[%s278 + $0x28] sm:%s270] %v289
                %v291 = vld [vmem:[%s277 + $0x60] sm:%s270]
                %292 = vst [vmem:[%s278 + $0x30] sm:%s270] %v291
                %v293 = vld [vmem:[%s277 + $0x68] sm:%s270]
                %294 = vst [vmem:[%s278 + $0x38] sm:%s270] %v293
                %v295 = vld [vmem:[%s277 + $0x80] sm:%s270]
                %296 = vst [vmem:[%s278 + $0x40] sm:%s270] %v295
                %v297 = vld [vmem:[%s277 + $0x88] sm:%s270]
                %298 = vst [vmem:[%s278 + $0x48] sm:%s270] %v297
                %v299 = vld [vmem:[%s277 + $0xa0] sm:%s270]
                %300 = vst [vmem:[%s278 + $0x50] sm:%s270] %v299
                %v301 = vld [vmem:[%s277 + $0xa8] sm:%s270]
                %302 = vst [vmem:[%s278 + $0x58] sm:%s270] %v301
                %v303 = vld [vmem:[%s277 + $0xc0] sm:%s270]
                %304 = vst [vmem:[%s278 + $0x60] sm:%s270] %v303
                %v305 = vld [vmem:[%s277 + $0xc8] sm:%s270]
                %306 = vst [vmem:[%s278 + $0x68] sm:%s270] %v305
                %v307 = vld [vmem:[%s277 + $0xe0] sm:%s270]
                %308 = vst [vmem:[%s278 + $0x70] sm:%s270] %v307
                %v309 = vld [vmem:[%s277 + $0xe8] sm:%s270]
                %310 = vst [vmem:[%s278 + $0x78] sm:%s270] %v309
              $region65: #{tpu_custom_call.1} parent=59 // loop_footer
                %s276 = sadd.s32 1, %s272
              $region66: #{tpu_custom_call.1} parent=59 // loop_footer_branch
                %271 = sbr.rel target = $region62
              $region67: #{tpu_custom_call.1} parent=59 // loop_exit
                _
            $region60: #{tpu_custom_call.1} parent=51 // pred_fallthru
              _
          $region52: #{tpu_custom_call.1} parent=47 // pred_fallthru
            _
          %355 = vnop
        $region48: #{tpu_custom_call.1} parent=43 // pred_fallthru
          _
      $region44: #{tpu_custom_call.1} parent=5 // pred_fallthru
        _
      %p356 = scmp.le.s32.totalorder 1, %s14
      %p357 = scmp.lt.s32.totalorder %s14, 3
      %p358 = pnand %p356, %p357
      %p359 = pneg %p358
      // Predicated region
      $region83: #{tpu_custom_call.1} parent=5 // pred_check
        _
      $region84: #{tpu_custom_call.1} parent=5 // pred_check_branch
        %361 = sbr.rel (%p358) target = $region86
      $region85: #{tpu_custom_call.1} parent=5 // pred_region
        %s362 = ssub.s32 %s14, 1
        %s363 = sand.u32 %s27, 1
        %s364 = sand.u32 %s27, 1
        %s365 = smul.addr %s364, 128
        %s366 = scalar_lea.vmem [#allocation4], %s365
        // Predicated region
        $region87: #{tpu_custom_call.1} parent=85 // pred_check
          %p367 = pneg %p40
        $region88: #{tpu_custom_call.1} parent=85 // pred_check_branch
          %369 = sbr.rel (%p367) target = $region90
        $region89: #{tpu_custom_call.1} parent=85 // pred_region
          _
        $region90: #{tpu_custom_call.1} parent=85 // pred_fallthru
          _
        %s370 = sand.u32 %s27, 1
        %s371 = sand.u32 %s27, 1
        %s372 = smul.addr %s371, 128
        %s373 = scalar_lea.vmem [#allocation4], %s372
        %p374 = pneg %p40
        %p375 = pneg %p37
        %p376 = pneg %p61
        %p377 = pneg %p58
        %p378 = pneg %p82
        %p379 = pneg %p79
        %p380 = pneg %p103
        %p381 = pneg %p100
        %p382 = pneg %p124
        %p383 = pneg %p121
        %p384 = pneg %p145
        %p385 = pneg %p142
        %p386 = pneg %p166
        %p387 = pneg %p163
        %p388 = pneg %p187
        %p389 = pneg %p184
        %p390 = pneg %p213
        %p391 = pneg %p210
        %s392 = sand.u32 %s200, 1
        %s393 = sand.u32 %s200, 1
        %s394 = smul.addr %s393, 128
        %s395 = scalar_lea.vmem [#allocation5], %s394
        %s396 = smul.u32 2, %s19
        %s397 = smul.u32 2, %s19
        %v398 = vld [vmem:[%s366] sm:$0xff]
        %v399 = vld [vmem:[%s366 + $0x8] sm:$0xff]
        %v400 = vld [vmem:[%s366 + $0x10] sm:$0xff]
        %v401 = vld [vmem:[%s366 + $0x18] sm:$0xff]
        %v402 = vld [vmem:[%s366 + $0x20] sm:$0xff]
        %v403 = vld [vmem:[%s366 + $0x28] sm:$0xff]
        %v404 = vld [vmem:[%s366 + $0x30] sm:$0xff]
        %v405 = vld [vmem:[%s366 + $0x38] sm:$0xff]
        %v406 = vld [vmem:[%s366 + $0x40] sm:$0xff]
        %v407 = vld [vmem:[%s366 + $0x48] sm:$0xff]
        %v408 = vld [vmem:[%s366 + $0x50] sm:$0xff]
        %v409 = vld [vmem:[%s366 + $0x58] sm:$0xff]
        %v410 = vld [vmem:[%s366 + $0x60] sm:$0xff]
        %v411 = vld [vmem:[%s366 + $0x68] sm:$0xff]
        %v412 = vld [vmem:[%s366 + $0x70] sm:$0xff]
        %v413 = vld [vmem:[%s366 + $0x78] sm:$0xff]
        %v414 = vld [vmem:[%s1] sm:$0xf]
        %v415 = vld [vmem:[%s3] sm:$0x1]
        %v417 = vlaneseq
        %v418 = vshrl.u32 %v417, 7
        %v419 = vsub.s32 0, %v418
        %v420 = vrot.slane %v415, %v419
        %vm422 = vcmask 31744
        %v424 = vsel %vm422, %v398, 0
        %v427 = vsel %vm422, %v399, 0
        %v430 = vsel %vm422, %v400, 0
        %v433 = vsel %vm422, %v401, 0
        %v436 = vsel %vm422, %v402, 0
        %v439 = vsel %vm422, %v403, 0
        %v442 = vsel %vm422, %v404, 0
        %v445 = vsel %vm422, %v405, 0
        %v448 = vsel %vm422, %v406, 0
        %v451 = vsel %vm422, %v407, 0
        %v454 = vsel %vm422, %v408, 0
        %v457 = vsel %vm422, %v409, 0
        %v460 = vsel %vm422, %v410, 0
        %v463 = vsel %vm422, %v411, 0
        %v466 = vsel %vm422, %v412, 0
        %v469 = vsel %vm422, %v413, 0
        %vm471 = vcmask 1043456
        %v473 = vsel %vm471, %v414, 0
        %475 = vmatprep.subr.mxu0 0.0
        %476 = vmatpush1.msra.mxu0 0.0
        %477 = vmatprep.subr.mxu0 0.0
        %478 = vmatpush1.msra.mxu0 0.0
        %479 = vmatprep.subr.mxu0 0.0
        %480 = vmatpush1.msra.mxu0 0.0
        %481 = vmatprep.subr.mxu0 0.0
        %482 = vmatpush1.msra.mxu0 0.0
        %483 = vmatprep.subr.mxu0 0.0
        %484 = vmatpush1.msra.mxu0 0.0
        %485 = vmatprep.subr.mxu0 0.0
        %486 = vmatpush1.msra.mxu0 0.0
        %487 = vmatprep.subr.mxu0 0.0
        %488 = vmatpush1.msra.mxu0 0.0
        %489 = vmatprep.subr.mxu0 0.0
        %490 = vmatpush1.msra.mxu0 0.0
        %491 = vmatprep.subr.mxu0 0.0
        %492 = vmatpush1.msra.mxu0 0.0
        %493 = vmatprep.subr.mxu0 0.0
        %494 = vmatpush1.msra.mxu0 0.0
        %495 = vmatprep.subr.mxu0 0.0
        %496 = vmatpush1.msra.mxu0 0.0
        %497 = vmatprep.subr.mxu0 0.0
        %498 = vmatpush1.msra.mxu0 0.0
        %499 = vmatprep.subr.mxu0 0.0
        %500 = vmatpush1.msra.mxu0 0.0
        %501 = vmatprep.subr.mxu0 0.0
        %502 = vmatpush1.msra.mxu0 0.0
        %503 = vmatprep.subr.mxu0 0.0
        %504 = vmatpush1.msra.mxu0 0.0
        %505 = vmatprep.subr.mxu0 0.0
        %506 = vmatpush1.msra.mxu0 %v473
        %507 = vmatprep.subr.mxu0 0.0
        %508 = vmatpush2.msra.mxu0 0.0
        %509 = vmatprep.subr.mxu0 0.0
        %510 = vmatpush2.msra.mxu0 0.0
        %511 = vmatprep.subr.mxu0 0.0
        %512 = vmatpush2.msra.mxu0 0.0
        %513 = vmatprep.subr.mxu0 0.0
        %514 = vmatpush2.msra.mxu0 0.0
        %515 = vmatprep.subr.mxu0 0.0
        %516 = vmatpush2.msra.mxu0 0.0
        %517 = vmatprep.subr.mxu0 0.0
        %518 = vmatpush2.msra.mxu0 0.0
        %519 = vmatprep.subr.mxu0 0.0
        %520 = vmatpush2.msra.mxu0 0.0
        %521 = vmatprep.subr.mxu0 0.0
        %522 = vmatpush2.msra.mxu0 0.0
        %523 = vmatprep.subr.mxu0 0.0
        %524 = vmatpush2.msra.mxu0 0.0
        %525 = vmatprep.subr.mxu0 0.0
        %526 = vmatpush2.msra.mxu0 0.0
        %527 = vmatprep.subr.mxu0 0.0
        %528 = vmatpush2.msra.mxu0 0.0
        %529 = vmatprep.subr.mxu0 0.0
        %530 = vmatpush2.msra.mxu0 0.0
        %531 = vmatprep.subr.mxu0 0.0
        %532 = vmatpush2.msra.mxu0 0.0
        %533 = vmatprep.subr.mxu0 0.0
        %534 = vmatpush2.msra.mxu0 0.0
        %535 = vmatprep.subr.mxu0 0.0
        %536 = vmatpush2.msra.mxu0 0.0
        %537 = vmatprep.subr.mxu0 0.0
        %538 = vmatpush2.msra.mxu0 0.0
        %539 = vmatprep.mubr.f32.mxu0 0.0
        %540 = vmatmul.mubr.f32.gmra.mxu0 %v424
        %v541 = vpop.f32.mrf.mxu0
        %v542 = vadd.f32 %v420, %v541
        %v543 = vpop.f32.mrf.mxu0
        %544 = vmatprep.mubr.f32.mxu0 0.0
        %545 = vmatmul.mubr.f32.gmra.mxu0 %v427
        %v546 = vpop.f32.mrf.mxu0
        %v547 = vadd.f32 %v420, %v546
        %v548 = vpop.f32.mrf.mxu0
        %549 = vmatprep.mubr.f32.mxu0 0.0
        %550 = vmatmul.mubr.f32.gmra.mxu0 %v430
        %v551 = vpop.f32.mrf.mxu0
        %v552 = vadd.f32 %v420, %v551
        %v553 = vpop.f32.mrf.mxu0
        %554 = vmatprep.mubr.f32.mxu0 0.0
        %555 = vmatmul.mubr.f32.gmra.mxu0 %v433
        %v556 = vpop.f32.mrf.mxu0
        %v557 = vadd.f32 %v420, %v556
        %v558 = vpop.f32.mrf.mxu0
        %559 = vmatprep.mubr.f32.mxu0 0.0
        %560 = vmatmul.mubr.f32.gmra.mxu0 %v436
        %v561 = vpop.f32.mrf.mxu0
        %v562 = vadd.f32 %v420, %v561
        %v563 = vpop.f32.mrf.mxu0
        %564 = vmatprep.mubr.f32.mxu0 0.0
        %565 = vmatmul.mubr.f32.gmra.mxu0 %v439
        %v566 = vpop.f32.mrf.mxu0
        %v567 = vadd.f32 %v420, %v566
        %v568 = vpop.f32.mrf.mxu0
        %569 = vmatprep.mubr.f32.mxu0 0.0
        %570 = vmatmul.mubr.f32.gmra.mxu0 %v442
        %v571 = vpop.f32.mrf.mxu0
        %v572 = vadd.f32 %v420, %v571
        %v573 = vpop.f32.mrf.mxu0
        %574 = vmatprep.mubr.f32.mxu0 0.0
        %575 = vmatmul.mubr.f32.gmra.mxu0 %v445
        %v576 = vpop.f32.mrf.mxu0
        %v577 = vadd.f32 %v420, %v576
        %v578 = vpop.f32.mrf.mxu0
        %579 = vmatprep.mubr.f32.mxu0 0.0
        %580 = vmatmul.mubr.f32.gmra.mxu0 %v448
        %v581 = vpop.f32.mrf.mxu0
        %v582 = vadd.f32 %v420, %v581
        %v583 = vpop.f32.mrf.mxu0
        %584 = vmatprep.mubr.f32.mxu0 0.0
        %585 = vmatmul.mubr.f32.gmra.mxu0 %v451
        %v586 = vpop.f32.mrf.mxu0
        %v587 = vadd.f32 %v420, %v586
        %v588 = vpop.f32.mrf.mxu0
        %589 = vmatprep.mubr.f32.mxu0 0.0
        %590 = vmatmul.mubr.f32.gmra.mxu0 %v454
        %v591 = vpop.f32.mrf.mxu0
        %v592 = vadd.f32 %v420, %v591
        %v593 = vpop.f32.mrf.mxu0
        %594 = vmatprep.mubr.f32.mxu0 0.0
        %595 = vmatmul.mubr.f32.gmra.mxu0 %v457
        %v596 = vpop.f32.mrf.mxu0
        %v597 = vadd.f32 %v420, %v596
        %v598 = vpop.f32.mrf.mxu0
        %599 = vmatprep.mubr.f32.mxu0 0.0
        %600 = vmatmul.mubr.f32.gmra.mxu0 %v460
        %v601 = vpop.f32.mrf.mxu0
        %v602 = vadd.f32 %v420, %v601
        %v603 = vpop.f32.mrf.mxu0
        %604 = vmatprep.mubr.f32.mxu0 0.0
        %605 = vmatmul.mubr.f32.gmra.mxu0 %v463
        %v606 = vpop.f32.mrf.mxu0
        %v607 = vadd.f32 %v420, %v606
        %v608 = vpop.f32.mrf.mxu0
        %609 = vmatprep.mubr.f32.mxu0 0.0
        %610 = vmatmul.mubr.f32.gmra.mxu0 %v466
        %v611 = vpop.f32.mrf.mxu0
        %v612 = vadd.f32 %v420, %v611
        %v613 = vpop.f32.mrf.mxu0
        %614 = vmatprep.mubr.f32.mxu0 0.0
        %615 = vmatmul.mubr.f32.gmra.mxu0 %v469
        %v616 = vpop.f32.mrf.mxu0
        %v617 = vadd.f32 %v420, %v616
        %v618 = vpop.f32.mrf.mxu0
        %619 = vdwg.mxu0
        %620 = vst [vmem:[#allocation2] sm:$0xff] %v542
        %621 = vst [vmem:[#allocation2 + $0x8] sm:$0xff] %v547
        %622 = vst [vmem:[#allocation2 + $0x10] sm:$0xff] %v552
        %623 = vst [vmem:[#allocation2 + $0x18] sm:$0xff] %v557
        %624 = vst [vmem:[#allocation2 + $0x20] sm:$0xff] %v562
        %625 = vst [vmem:[#allocation2 + $0x28] sm:$0xff] %v567
        %626 = vst [vmem:[#allocation2 + $0x30] sm:$0xff] %v572
        %627 = vst [vmem:[#allocation2 + $0x38] sm:$0xff] %v577
        %628 = vst [vmem:[#allocation2 + $0x40] sm:$0xff] %v582
        %629 = vst [vmem:[#allocation2 + $0x48] sm:$0xff] %v587
        %630 = vst [vmem:[#allocation2 + $0x50] sm:$0xff] %v592
        %631 = vst [vmem:[#allocation2 + $0x58] sm:$0xff] %v597
        %632 = vst [vmem:[#allocation2 + $0x60] sm:$0xff] %v602
        %633 = vst [vmem:[#allocation2 + $0x68] sm:$0xff] %v607
        %634 = vst [vmem:[#allocation2 + $0x70] sm:$0xff] %v612
        %635 = vst [vmem:[#allocation2 + $0x78] sm:$0xff] %v617
        %v636 = vlaneseq
        %v637 = vand.u32 %v636, 127
        %vm638 = vcmp.ge.s32.totalorder %v637, 64
        %vm639 = vcmp.lt.s32.totalorder %v637, 96
        %vm640 = vmand %vm638, %vm639
        %v641 = vld [vmem:[%s2] sm:$0xff]
        %v642 = vld [vmem:[%s2 + $0x8] sm:$0xff]
        %v643 = vld [vmem:[%s2 + $0x10] sm:$0xff]
        %v644 = vld [vmem:[%s2 + $0x18] sm:$0xff]
        %v645 = vld [vmem:[#allocation2] sm:$0xff]
        %v646 = vld [vmem:[#allocation2 + $0x8] sm:$0xff]
        %vm647 = vcmask 261120
        %v649 = vsel %vm647, 0.0, 0
        %651 = vmatprep.subr.mxu0 0.0
        %652 = vmatpush1.msra.mxu0 0.0
        %653 = vmatprep.subr.mxu0 0.0
        %654 = vmatpush1.msra.mxu0 0.0
        %655 = vmatprep.subr.mxu0 0.0
        %656 = vmatpush1.msra.mxu0 0.0
        %657 = vmatprep.subr.mxu0 0.0
        %658 = vmatpush1.msra.mxu0 0.0
        %659 = vmatprep.subr.mxu0 0.0
        %660 = vmatpush1.msra.mxu0 0.0
        %661 = vmatprep.subr.mxu0 0.0
        %662 = vmatpush1.msra.mxu0 0.0
        %663 = vmatprep.subr.mxu0 0.0
        %664 = vmatpush1.msra.mxu0 0.0
        %665 = vmatprep.subr.mxu0 0.0
        %666 = vmatpush1.msra.mxu0 0.0
        %667 = vmatprep.subr.mxu0 0.0
        %668 = vmatpush1.msra.mxu0 0.0
        %669 = vmatprep.subr.mxu0 0.0
        %670 = vmatpush1.msra.mxu0 0.0
        %671 = vmatprep.subr.mxu0 0.0
        %672 = vmatpush1.msra.mxu0 0.0
        %673 = vmatprep.subr.mxu0 0.0
        %674 = vmatpush1.msra.mxu0 0.0
        %675 = vmatprep.subr.mxu0 0.0
        %676 = vmatpush1.msra.mxu0 %v644
        %677 = vmatprep.subr.mxu0 0.0
        %678 = vmatpush1.msra.mxu0 %v643
        %679 = vmatprep.subr.mxu0 0.0
        %680 = vmatpush1.msra.mxu0 %v642
        %681 = vmatprep.subr.mxu0 0.0
        %682 = vmatpush1.msra.mxu0 %v641
        %683 = vmatprep.subr.mxu0 0.0
        %684 = vmatpush2.msra.mxu0 0.0
        %685 = vmatprep.subr.mxu0 0.0
        %686 = vmatpush2.msra.mxu0 0.0
        %687 = vmatprep.subr.mxu0 0.0
        %688 = vmatpush2.msra.mxu0 0.0
        %689 = vmatprep.subr.mxu0 0.0
        %690 = vmatpush2.msra.mxu0 0.0
        %691 = vmatprep.subr.mxu0 0.0
        %692 = vmatpush2.msra.mxu0 0.0
        %693 = vmatprep.subr.mxu0 0.0
        %694 = vmatpush2.msra.mxu0 0.0
        %695 = vmatprep.subr.mxu0 0.0
        %696 = vmatpush2.msra.mxu0 0.0
        %697 = vmatprep.subr.mxu0 0.0
        %698 = vmatpush2.msra.mxu0 0.0
        %699 = vmatprep.subr.mxu0 0.0
        %700 = vmatpush2.msra.mxu0 0.0
        %701 = vmatprep.subr.mxu0 0.0
        %702 = vmatpush2.msra.mxu0 0.0
        %703 = vmatprep.subr.mxu0 0.0
        %704 = vmatpush2.msra.mxu0 0.0
        %705 = vmatprep.subr.mxu0 0.0
        %706 = vmatpush2.msra.mxu0 0.0
        %707 = vmatprep.subr.mxu0 0.0
        %708 = vmatpush2.msra.mxu0 0.0
        %709 = vmatprep.subr.mxu0 0.0
        %710 = vmatpush2.msra.mxu0 0.0
        %711 = vmatprep.subr.mxu0 0.0
        %712 = vmatpush2.msra.mxu0 0.0
        %713 = vmatprep.subr.mxu0 0.0
        %714 = vmatpush2.msra.mxu0 0.0
        %715 = vmatprep.mubr.f32.mxu0 0.0
        %716 = vmatmul.mubr.f32.gmra.mxu0 %v649
        %v717 = vpop.f32.mrf.mxu0
        %v718 = vadd.f32 0.0, %v717
        %v719 = vpop.f32.mrf.mxu0
        %720 = vmatprep.mubr.f32.mxu0 0.0
        %721 = vmatmul.mubr.f32.gmra.mxu0 %v649
        %v722 = vpop.f32.mrf.mxu0
        %v723 = vadd.f32 0.0, %v722
        %v724 = vpop.f32.mrf.mxu0
        %725 = vdwg.mxu0
        %v726 = vadd.f32 %v645, %v718
        %v727 = vadd.f32 %v646, %v723
        %v728 = vmul.f32 %v726, 0.5
        %v729 = vmul.f32 %v727, 0.5
        %v730 = vtanh.pop %v728
        %v731 = vtanh.pop %v729
        %v732 = vmul.f32 %v730, 0.5
        %v733 = vmul.f32 %v731, 0.5
        %v734 = vadd.f32 %v732, 0.5
        %v735 = vadd.f32 %v733, 0.5
        %v736 = vtanh.pop %v726
        %v737 = vtanh.pop %v727
        %v738 = vsel %vm640, %v736, %v734
        %v739 = vsel %vm640, %v737, %v735
        %v740 = vmul.f32 %v738, 0.0
        %v741 = vmul.f32 %v739, 0.0
        %744 = vrot.lane.b32.xlu0 %v738, 64
        %v745 = vpop.permute.xlu0 %744
        %746 = vrot.lane.b32.xlu0 %v739, 64
        %v747 = vpop.permute.xlu0 %746
        %v750 = vmul.f32 %v738, %v745
        %v751 = vmul.f32 %v739, %v747
        %754 = vrot.lane.b32.xlu0 %v750, 32
        %v755 = vpop.permute.xlu0 %754
        %756 = vrot.lane.b32.xlu0 %v751, 32
        %v757 = vpop.permute.xlu0 %756
        %v760 = vadd.f32 %v740, %v755
        %v761 = vadd.f32 %v741, %v757
        %v762 = vtanh.pop %v760
        %v763 = vtanh.pop %v761
        %766 = vrot.lane.b32.xlu0 %v762, 64
        %v767 = vpop.permute.xlu0 %766
        %768 = vrot.lane.b32.xlu0 %v763, 64
        %v769 = vpop.permute.xlu0 %768
        %v772 = vmul.f32 %v738, %v767
        %v773 = vmul.f32 %v739, %v769
        %776 = vrot.lane.b32.xlu0 %v772, 32
        %v777 = vpop.permute.xlu0 %776
        %778 = vrot.lane.b32.xlu0 %v773, 32
        %v779 = vpop.permute.xlu0 %778
        %782 = vst.msk [vmem:[#allocation3] sm:$0xff] %vm647, %v777
        %783 = vst.msk [vmem:[#allocation3 + $0x8] sm:$0xff] %vm647, %v779
        %s784 = scalar_lea.vmem [#allocation2], 16
        %v785 = vld [vmem:[%s784] sm:$0xff]
        %v786 = vld [vmem:[%s784 + $0x8] sm:$0xff]
        %v787 = vsel %vm647, %v777, 0
        %v789 = vsel %vm647, %v779, 0
        %791 = vmatprep.subr.mxu0 0.0
        %792 = vmatpush1.msra.mxu0 0.0
        %793 = vmatprep.subr.mxu0 0.0
        %794 = vmatpush1.msra.mxu0 0.0
        %795 = vmatprep.subr.mxu0 0.0
        %796 = vmatpush1.msra.mxu0 0.0
        %797 = vmatprep.subr.mxu0 0.0
        %798 = vmatpush1.msra.mxu0 0.0
        %799 = vmatprep.subr.mxu0 0.0
        %800 = vmatpush1.msra.mxu0 0.0
        %801 = vmatprep.subr.mxu0 0.0
        %802 = vmatpush1.msra.mxu0 0.0
        %803 = vmatprep.subr.mxu0 0.0
        %804 = vmatpush1.msra.mxu0 0.0
        %805 = vmatprep.subr.mxu0 0.0
        %806 = vmatpush1.msra.mxu0 0.0
        %807 = vmatprep.subr.mxu0 0.0
        %808 = vmatpush1.msra.mxu0 0.0
        %809 = vmatprep.subr.mxu0 0.0
        %810 = vmatpush1.msra.mxu0 0.0
        %811 = vmatprep.subr.mxu0 0.0
        %812 = vmatpush1.msra.mxu0 0.0
        %813 = vmatprep.subr.mxu0 0.0
        %814 = vmatpush1.msra.mxu0 0.0
        %815 = vmatprep.subr.mxu0 0.0
        %816 = vmatpush1.msra.mxu0 %v644
        %817 = vmatprep.subr.mxu0 0.0
        %818 = vmatpush1.msra.mxu0 %v643
        %819 = vmatprep.subr.mxu0 0.0
        %820 = vmatpush1.msra.mxu0 %v642
        %821 = vmatprep.subr.mxu0 0.0
        %822 = vmatpush1.msra.mxu0 %v641
        %823 = vmatprep.subr.mxu0 0.0
        %824 = vmatpush2.msra.mxu0 0.0
        %825 = vmatprep.subr.mxu0 0.0
        %826 = vmatpush2.msra.mxu0 0.0
        %827 = vmatprep.subr.mxu0 0.0
        %828 = vmatpush2.msra.mxu0 0.0
        %829 = vmatprep.subr.mxu0 0.0
        %830 = vmatpush2.msra.mxu0 0.0
        %831 = vmatprep.subr.mxu0 0.0
        %832 = vmatpush2.msra.mxu0 0.0
        %833 = vmatprep.subr.mxu0 0.0
        %834 = vmatpush2.msra.mxu0 0.0
        %835 = vmatprep.subr.mxu0 0.0
        %836 = vmatpush2.msra.mxu0 0.0
        %837 = vmatprep.subr.mxu0 0.0
        %838 = vmatpush2.msra.mxu0 0.0
        %839 = vmatprep.subr.mxu0 0.0
        %840 = vmatpush2.msra.mxu0 0.0
        %841 = vmatprep.subr.mxu0 0.0
        %842 = vmatpush2.msra.mxu0 0.0
        %843 = vmatprep.subr.mxu0 0.0
        %844 = vmatpush2.msra.mxu0 0.0
        %845 = vmatprep.subr.mxu0 0.0
        %846 = vmatpush2.msra.mxu0 0.0
        %847 = vmatprep.subr.mxu0 0.0
        %848 = vmatpush2.msra.mxu0 0.0
        %849 = vmatprep.subr.mxu0 0.0
        %850 = vmatpush2.msra.mxu0 0.0
        %851 = vmatprep.subr.mxu0 0.0
        %852 = vmatpush2.msra.mxu0 0.0
        %853 = vmatprep.subr.mxu0 0.0
        %854 = vmatpush2.msra.mxu0 0.0
        %855 = vmatprep.mubr.f32.mxu0 0.0
        %856 = vmatmul.mubr.f32.gmra.mxu0 %v787
        %v857 = vpop.f32.mrf.mxu0
        %v858 = vadd.f32 0.0, %v857
        %v859 = vpop.f32.mrf.mxu0
        %860 = vmatprep.mubr.f32.mxu0 0.0
        %861 = vmatmul.mubr.f32.gmra.mxu0 %v789
        %v862 = vpop.f32.mrf.mxu0
        %v863 = vadd.f32 0.0, %v862
        %v864 = vpop.f32.mrf.mxu0
        %865 = vdwg.mxu0
        %v866 = vadd.f32 %v785, %v858
        %v867 = vadd.f32 %v786, %v863
        %v868 = vmul.f32 %v866, 0.5
        %v869 = vmul.f32 %v867, 0.5
        %v870 = vtanh.pop %v868
        %v871 = vtanh.pop %v869
        %v872 = vmul.f32 %v870, 0.5
        %v873 = vmul.f32 %v871, 0.5
        %v874 = vadd.f32 %v872, 0.5
        %v875 = vadd.f32 %v873, 0.5
        %v876 = vtanh.pop %v866
        %v877 = vtanh.pop %v867
        %v878 = vsel %vm640, %v876, %v874
        %v879 = vsel %vm640, %v877, %v875
        %v880 = vmul.f32 %v878, %v760
        %v881 = vmul.f32 %v879, %v761
        %884 = vrot.lane.b32.xlu0 %v878, 64
        %v885 = vpop.permute.xlu0 %884
        %886 = vrot.lane.b32.xlu0 %v879, 64
        %v887 = vpop.permute.xlu0 %886
        %v890 = vmul.f32 %v878, %v885
        %v891 = vmul.f32 %v879, %v887
        %894 = vrot.lane.b32.xlu0 %v890, 32
        %v895 = vpop.permute.xlu0 %894
        %896 = vrot.lane.b32.xlu0 %v891, 32
        %v897 = vpop.permute.xlu0 %896
        %v900 = vadd.f32 %v880, %v895
        %v901 = vadd.f32 %v881, %v897
        %v902 = vtanh.pop %v900
        %v903 = vtanh.pop %v901
        %906 = vrot.lane.b32.xlu0 %v902, 64
        %v907 = vpop.permute.xlu0 %906
        %908 = vrot.lane.b32.xlu0 %v903, 64
        %v909 = vpop.permute.xlu0 %908
        %v912 = vmul.f32 %v878, %v907
        %v913 = vmul.f32 %v879, %v909
        %916 = vrot.lane.b32.xlu0 %v912, 32
        %v917 = vpop.permute.xlu0 %916
        %918 = vrot.lane.b32.xlu0 %v913, 32
        %v919 = vpop.permute.xlu0 %918
        %s922 = scalar_lea.vmem [#allocation3], 16
        %923 = vst.msk [vmem:[%s922] sm:$0xff] %vm647, %v917
        %924 = vst.msk [vmem:[%s922 + $0x8] sm:$0xff] %vm647, %v919
        %s925 = scalar_lea.vmem [#allocation2], 32
        %v926 = vld [vmem:[%s925] sm:$0xff]
        %v927 = vld [vmem:[%s925 + $0x8] sm:$0xff]
        %v928 = vsel %vm647, %v917, 0
        %v930 = vsel %vm647, %v919, 0
        %932 = vmatprep.subr.mxu0 0.0
        %933 = vmatpush1.msra.mxu0 0.0
        %934 = vmatprep.subr.mxu0 0.0
        %935 = vmatpush1.msra.mxu0 0.0
        %936 = vmatprep.subr.mxu0 0.0
        %937 = vmatpush1.msra.mxu0 0.0
        %938 = vmatprep.subr.mxu0 0.0
        %939 = vmatpush1.msra.mxu0 0.0
        %940 = vmatprep.subr.mxu0 0.0
        %941 = vmatpush1.msra.mxu0 0.0
        %942 = vmatprep.subr.mxu0 0.0
        %943 = vmatpush1.msra.mxu0 0.0
        %944 = vmatprep.subr.mxu0 0.0
        %945 = vmatpush1.msra.mxu0 0.0
        %946 = vmatprep.subr.mxu0 0.0
        %947 = vmatpush1.msra.mxu0 0.0
        %948 = vmatprep.subr.mxu0 0.0
        %949 = vmatpush1.msra.mxu0 0.0
        %950 = vmatprep.subr.mxu0 0.0
        %951 = vmatpush1.msra.mxu0 0.0
        %952 = vmatprep.subr.mxu0 0.0
        %953 = vmatpush1.msra.mxu0 0.0
        %954 = vmatprep.subr.mxu0 0.0
        %955 = vmatpush1.msra.mxu0 0.0
        %956 = vmatprep.subr.mxu0 0.0
        %957 = vmatpush1.msra.mxu0 %v644
        %958 = vmatprep.subr.mxu0 0.0
        %959 = vmatpush1.msra.mxu0 %v643
        %960 = vmatprep.subr.mxu0 0.0
        %961 = vmatpush1.msra.mxu0 %v642
        %962 = vmatprep.subr.mxu0 0.0
        %963 = vmatpush1.msra.mxu0 %v641
        %964 = vmatprep.subr.mxu0 0.0
        %965 = vmatpush2.msra.mxu0 0.0
        %966 = vmatprep.subr.mxu0 0.0
        %967 = vmatpush2.msra.mxu0 0.0
        %968 = vmatprep.subr.mxu0 0.0
        %969 = vmatpush2.msra.mxu0 0.0
        %970 = vmatprep.subr.mxu0 0.0
        %971 = vmatpush2.msra.mxu0 0.0
        %972 = vmatprep.subr.mxu0 0.0
        %973 = vmatpush2.msra.mxu0 0.0
        %974 = vmatprep.subr.mxu0 0.0
        %975 = vmatpush2.msra.mxu0 0.0
        %976 = vmatprep.subr.mxu0 0.0
        %977 = vmatpush2.msra.mxu0 0.0
        %978 = vmatprep.subr.mxu0 0.0
        %979 = vmatpush2.msra.mxu0 0.0
        %980 = vmatprep.subr.mxu0 0.0
        %981 = vmatpush2.msra.mxu0 0.0
        %982 = vmatprep.subr.mxu0 0.0
        %983 = vmatpush2.msra.mxu0 0.0
        %984 = vmatprep.subr.mxu0 0.0
        %985 = vmatpush2.msra.mxu0 0.0
        %986 = vmatprep.subr.mxu0 0.0
        %987 = vmatpush2.msra.mxu0 0.0
        %988 = vmatprep.subr.mxu0 0.0
        %989 = vmatpush2.msra.mxu0 0.0
        %990 = vmatprep.subr.mxu0 0.0
        %991 = vmatpush2.msra.mxu0 0.0
        %992 = vmatprep.subr.mxu0 0.0
        %993 = vmatpush2.msra.mxu0 0.0
        %994 = vmatprep.subr.mxu0 0.0
        %995 = vmatpush2.msra.mxu0 0.0
        %996 = vmatprep.mubr.f32.mxu0 0.0
        %997 = vmatmul.mubr.f32.gmra.mxu0 %v928
        %v998 = vpop.f32.mrf.mxu0
        %v999 = vadd.f32 0.0, %v998
        %v1000 = vpop.f32.mrf.mxu0
        %1001 = vmatprep.mubr.f32.mxu0 0.0
        %1002 = vmatmul.mubr.f32.gmra.mxu0 %v930
        %v1003 = vpop.f32.mrf.mxu0
        %v1004 = vadd.f32 0.0, %v1003
        %v1005 = vpop.f32.mrf.mxu0
        %1006 = vdwg.mxu0
        %v1007 = vadd.f32 %v926, %v999
        %v1008 = vadd.f32 %v927, %v1004
        %v1009 = vmul.f32 %v1007, 0.5
        %v1010 = vmul.f32 %v1008, 0.5
        %v1011 = vtanh.pop %v1009
        %v1012 = vtanh.pop %v1010
        %v1013 = vmul.f32 %v1011, 0.5
        %v1014 = vmul.f32 %v1012, 0.5
        %v1015 = vadd.f32 %v1013, 0.5
        %v1016 = vadd.f32 %v1014, 0.5
        %v1017 = vtanh.pop %v1007
        %v1018 = vtanh.pop %v1008
        %v1019 = vsel %vm640, %v1017, %v1015
        %v1020 = vsel %vm640, %v1018, %v1016
        %v1021 = vmul.f32 %v1019, %v900
        %v1022 = vmul.f32 %v1020, %v901
        %1025 = vrot.lane.b32.xlu0 %v1019, 64
        %v1026 = vpop.permute.xlu0 %1025
        %1027 = vrot.lane.b32.xlu0 %v1020, 64
        %v1028 = vpop.permute.xlu0 %1027
        %v1031 = vmul.f32 %v1019, %v1026
        %v1032 = vmul.f32 %v1020, %v1028
        %1035 = vrot.lane.b32.xlu0 %v1031, 32
        %v1036 = vpop.permute.xlu0 %1035
        %1037 = vrot.lane.b32.xlu0 %v1032, 32
        %v1038 = vpop.permute.xlu0 %1037
        %v1041 = vadd.f32 %v1021, %v1036
        %v1042 = vadd.f32 %v1022, %v1038
        %v1043 = vtanh.pop %v1041
        %v1044 = vtanh.pop %v1042
        %1047 = vrot.lane.b32.xlu0 %v1043, 64
        %v1048 = vpop.permute.xlu0 %1047
        %1049 = vrot.lane.b32.xlu0 %v1044, 64
        %v1050 = vpop.permute.xlu0 %1049
        %v1053 = vmul.f32 %v1019, %v1048
        %v1054 = vmul.f32 %v1020, %v1050
        %1057 = vrot.lane.b32.xlu0 %v1053, 32
        %v1058 = vpop.permute.xlu0 %1057
        %1059 = vrot.lane.b32.xlu0 %v1054, 32
        %v1060 = vpop.permute.xlu0 %1059
        %s1063 = scalar_lea.vmem [#allocation3], 32
        %1064 = vst.msk [vmem:[%s1063] sm:$0xff] %vm647, %v1058
        %1065 = vst.msk [vmem:[%s1063 + $0x8] sm:$0xff] %vm647, %v1060
        %s1066 = scalar_lea.vmem [#allocation2], 48
        %v1067 = vld [vmem:[%s1066] sm:$0xff]
        %v1068 = vld [vmem:[%s1066 + $0x8] sm:$0xff]
        %v1069 = vsel %vm647, %v1058, 0
        %v1071 = vsel %vm647, %v1060, 0
        %1073 = vmatprep.subr.mxu0 0.0
        %1074 = vmatpush1.msra.mxu0 0.0
        %1075 = vmatprep.subr.mxu0 0.0
        %1076 = vmatpush1.msra.mxu0 0.0
        %1077 = vmatprep.subr.mxu0 0.0
        %1078 = vmatpush1.msra.mxu0 0.0
        %1079 = vmatprep.subr.mxu0 0.0
        %1080 = vmatpush1.msra.mxu0 0.0
        %1081 = vmatprep.subr.mxu0 0.0
        %1082 = vmatpush1.msra.mxu0 0.0
        %1083 = vmatprep.subr.mxu0 0.0
        %1084 = vmatpush1.msra.mxu0 0.0
        %1085 = vmatprep.subr.mxu0 0.0
        %1086 = vmatpush1.msra.mxu0 0.0
        %1087 = vmatprep.subr.mxu0 0.0
        %1088 = vmatpush1.msra.mxu0 0.0
        %1089 = vmatprep.subr.mxu0 0.0
        %1090 = vmatpush1.msra.mxu0 0.0
        %1091 = vmatprep.subr.mxu0 0.0
        %1092 = vmatpush1.msra.mxu0 0.0
        %1093 = vmatprep.subr.mxu0 0.0
        %1094 = vmatpush1.msra.mxu0 0.0
        %1095 = vmatprep.subr.mxu0 0.0
        %1096 = vmatpush1.msra.mxu0 0.0
        %1097 = vmatprep.subr.mxu0 0.0
        %1098 = vmatpush1.msra.mxu0 %v644
        %1099 = vmatprep.subr.mxu0 0.0
        %1100 = vmatpush1.msra.mxu0 %v643
        %1101 = vmatprep.subr.mxu0 0.0
        %1102 = vmatpush1.msra.mxu0 %v642
        %1103 = vmatprep.subr.mxu0 0.0
        %1104 = vmatpush1.msra.mxu0 %v641
        %1105 = vmatprep.subr.mxu0 0.0
        %1106 = vmatpush2.msra.mxu0 0.0
        %1107 = vmatprep.subr.mxu0 0.0
        %1108 = vmatpush2.msra.mxu0 0.0
        %1109 = vmatprep.subr.mxu0 0.0
        %1110 = vmatpush2.msra.mxu0 0.0
        %1111 = vmatprep.subr.mxu0 0.0
        %1112 = vmatpush2.msra.mxu0 0.0
        %1113 = vmatprep.subr.mxu0 0.0
        %1114 = vmatpush2.msra.mxu0 0.0
        %1115 = vmatprep.subr.mxu0 0.0
        %1116 = vmatpush2.msra.mxu0 0.0
        %1117 = vmatprep.subr.mxu0 0.0
        %1118 = vmatpush2.msra.mxu0 0.0
        %1119 = vmatprep.subr.mxu0 0.0
        %1120 = vmatpush2.msra.mxu0 0.0
        %1121 = vmatprep.subr.mxu0 0.0
        %1122 = vmatpush2.msra.mxu0 0.0
        %1123 = vmatprep.subr.mxu0 0.0
        %1124 = vmatpush2.msra.mxu0 0.0
        %1125 = vmatprep.subr.mxu0 0.0
        %1126 = vmatpush2.msra.mxu0 0.0
        %1127 = vmatprep.subr.mxu0 0.0
        %1128 = vmatpush2.msra.mxu0 0.0
        %1129 = vmatprep.subr.mxu0 0.0
        %1130 = vmatpush2.msra.mxu0 0.0
        %1131 = vmatprep.subr.mxu0 0.0
        %1132 = vmatpush2.msra.mxu0 0.0
        %1133 = vmatprep.subr.mxu0 0.0
        %1134 = vmatpush2.msra.mxu0 0.0
        %1135 = vmatprep.subr.mxu0 0.0
        %1136 = vmatpush2.msra.mxu0 0.0
        %1137 = vmatprep.mubr.f32.mxu0 0.0
        %1138 = vmatmul.mubr.f32.gmra.mxu0 %v1069
        %v1139 = vpop.f32.mrf.mxu0
        %v1140 = vadd.f32 0.0, %v1139
        %v1141 = vpop.f32.mrf.mxu0
        %1142 = vmatprep.mubr.f32.mxu0 0.0
        %1143 = vmatmul.mubr.f32.gmra.mxu0 %v1071
        %v1144 = vpop.f32.mrf.mxu0
        %v1145 = vadd.f32 0.0, %v1144
        %v1146 = vpop.f32.mrf.mxu0
        %1147 = vdwg.mxu0
        %v1148 = vadd.f32 %v1067, %v1140
        %v1149 = vadd.f32 %v1068, %v1145
        %v1150 = vmul.f32 %v1148, 0.5
        %v1151 = vmul.f32 %v1149, 0.5
        %v1152 = vtanh.pop %v1150
        %v1153 = vtanh.pop %v1151
        %v1154 = vmul.f32 %v1152, 0.5
        %v1155 = vmul.f32 %v1153, 0.5
        %v1156 = vadd.f32 %v1154, 0.5
        %v1157 = vadd.f32 %v1155, 0.5
        %v1158 = vtanh.pop %v1148
        %v1159 = vtanh.pop %v1149
        %v1160 = vsel %vm640, %v1158, %v1156
        %v1161 = vsel %vm640, %v1159, %v1157
        %v1162 = vmul.f32 %v1160, %v1041
        %v1163 = vmul.f32 %v1161, %v1042
        %1166 = vrot.lane.b32.xlu0 %v1160, 64
        %v1167 = vpop.permute.xlu0 %1166
        %1168 = vrot.lane.b32.xlu0 %v1161, 64
        %v1169 = vpop.permute.xlu0 %1168
        %v1172 = vmul.f32 %v1160, %v1167
        %v1173 = vmul.f32 %v1161, %v1169
        %1176 = vrot.lane.b32.xlu0 %v1172, 32
        %v1177 = vpop.permute.xlu0 %1176
        %1178 = vrot.lane.b32.xlu0 %v1173, 32
        %v1179 = vpop.permute.xlu0 %1178
        %v1182 = vadd.f32 %v1162, %v1177
        %v1183 = vadd.f32 %v1163, %v1179
        %v1184 = vtanh.pop %v1182
        %v1185 = vtanh.pop %v1183
        %1188 = vrot.lane.b32.xlu0 %v1184, 64
        %v1189 = vpop.permute.xlu0 %1188
        %1190 = vrot.lane.b32.xlu0 %v1185, 64
        %v1191 = vpop.permute.xlu0 %1190
        %v1194 = vmul.f32 %v1160, %v1189
        %v1195 = vmul.f32 %v1161, %v1191
        %1198 = vrot.lane.b32.xlu0 %v1194, 32
        %v1199 = vpop.permute.xlu0 %1198
        %1200 = vrot.lane.b32.xlu0 %v1195, 32
        %v1201 = vpop.permute.xlu0 %1200
        %s1204 = scalar_lea.vmem [#allocation3], 48
        %1205 = vst.msk [vmem:[%s1204] sm:$0xff] %vm647, %v1199
        %1206 = vst.msk [vmem:[%s1204 + $0x8] sm:$0xff] %vm647, %v1201
        %s1207 = scalar_lea.vmem [#allocation2], 64
        %v1208 = vld [vmem:[%s1207] sm:$0xff]
        %v1209 = vld [vmem:[%s1207 + $0x8] sm:$0xff]
        %v1210 = vsel %vm647, %v1199, 0
        %v1212 = vsel %vm647, %v1201, 0
        %1214 = vmatprep.subr.mxu0 0.0
        %1215 = vmatpush1.msra.mxu0 0.0
        %1216 = vmatprep.subr.mxu0 0.0
        %1217 = vmatpush1.msra.mxu0 0.0
        %1218 = vmatprep.subr.mxu0 0.0
        %1219 = vmatpush1.msra.mxu0 0.0
        %1220 = vmatprep.subr.mxu0 0.0
        %1221 = vmatpush1.msra.mxu0 0.0
        %1222 = vmatprep.subr.mxu0 0.0
        %1223 = vmatpush1.msra.mxu0 0.0
        %1224 = vmatprep.subr.mxu0 0.0
        %1225 = vmatpush1.msra.mxu0 0.0
        %1226 = vmatprep.subr.mxu0 0.0
        %1227 = vmatpush1.msra.mxu0 0.0
        %1228 = vmatprep.subr.mxu0 0.0
        %1229 = vmatpush1.msra.mxu0 0.0
        %1230 = vmatprep.subr.mxu0 0.0
        %1231 = vmatpush1.msra.mxu0 0.0
        %1232 = vmatprep.subr.mxu0 0.0
        %1233 = vmatpush1.msra.mxu0 0.0
        %1234 = vmatprep.subr.mxu0 0.0
        %1235 = vmatpush1.msra.mxu0 0.0
        %1236 = vmatprep.subr.mxu0 0.0
        %1237 = vmatpush1.msra.mxu0 0.0
        %1238 = vmatprep.subr.mxu0 0.0
        %1239 = vmatpush1.msra.mxu0 %v644
        %1240 = vmatprep.subr.mxu0 0.0
        %1241 = vmatpush1.msra.mxu0 %v643
        %1242 = vmatprep.subr.mxu0 0.0
        %1243 = vmatpush1.msra.mxu0 %v642
        %1244 = vmatprep.subr.mxu0 0.0
        %1245 = vmatpush1.msra.mxu0 %v641
        %1246 = vmatprep.subr.mxu0 0.0
        %1247 = vmatpush2.msra.mxu0 0.0
        %1248 = vmatprep.subr.mxu0 0.0
        %1249 = vmatpush2.msra.mxu0 0.0
        %1250 = vmatprep.subr.mxu0 0.0
        %1251 = vmatpush2.msra.mxu0 0.0
        %1252 = vmatprep.subr.mxu0 0.0
        %1253 = vmatpush2.msra.mxu0 0.0
        %1254 = vmatprep.subr.mxu0 0.0
        %1255 = vmatpush2.msra.mxu0 0.0
        %1256 = vmatprep.subr.mxu0 0.0
        %1257 = vmatpush2.msra.mxu0 0.0
        %1258 = vmatprep.subr.mxu0 0.0
        %1259 = vmatpush2.msra.mxu0 0.0
        %1260 = vmatprep.subr.mxu0 0.0
        %1261 = vmatpush2.msra.mxu0 0.0
        %1262 = vmatprep.subr.mxu0 0.0
        %1263 = vmatpush2.msra.mxu0 0.0
        %1264 = vmatprep.subr.mxu0 0.0
        %1265 = vmatpush2.msra.mxu0 0.0
        %1266 = vmatprep.subr.mxu0 0.0
        %1267 = vmatpush2.msra.mxu0 0.0
        %1268 = vmatprep.subr.mxu0 0.0
        %1269 = vmatpush2.msra.mxu0 0.0
        %1270 = vmatprep.subr.mxu0 0.0
        %1271 = vmatpush2.msra.mxu0 0.0
        %1272 = vmatprep.subr.mxu0 0.0
        %1273 = vmatpush2.msra.mxu0 0.0
        %1274 = vmatprep.subr.mxu0 0.0
        %1275 = vmatpush2.msra.mxu0 0.0
        %1276 = vmatprep.subr.mxu0 0.0
        %1277 = vmatpush2.msra.mxu0 0.0
        %1278 = vmatprep.mubr.f32.mxu0 0.0
        %1279 = vmatmul.mubr.f32.gmra.mxu0 %v1210
        %v1280 = vpop.f32.mrf.mxu0
        %v1281 = vadd.f32 0.0, %v1280
        %v1282 = vpop.f32.mrf.mxu0
        %1283 = vmatprep.mubr.f32.mxu0 0.0
        %1284 = vmatmul.mubr.f32.gmra.mxu0 %v1212
        %v1285 = vpop.f32.mrf.mxu0
        %v1286 = vadd.f32 0.0, %v1285
        %v1287 = vpop.f32.mrf.mxu0
        %1288 = vdwg.mxu0
        %v1289 = vadd.f32 %v1208, %v1281
        %v1290 = vadd.f32 %v1209, %v1286
        %v1291 = vmul.f32 %v1289, 0.5
        %v1292 = vmul.f32 %v1290, 0.5
        %v1293 = vtanh.pop %v1291
        %v1294 = vtanh.pop %v1292
        %v1295 = vmul.f32 %v1293, 0.5
        %v1296 = vmul.f32 %v1294, 0.5
        %v1297 = vadd.f32 %v1295, 0.5
        %v1298 = vadd.f32 %v1296, 0.5
        %v1299 = vtanh.pop %v1289
        %v1300 = vtanh.pop %v1290
        %v1301 = vsel %vm640, %v1299, %v1297
        %v1302 = vsel %vm640, %v1300, %v1298
        %v1303 = vmul.f32 %v1301, %v1182
        %v1304 = vmul.f32 %v1302, %v1183
        %1307 = vrot.lane.b32.xlu0 %v1301, 64
        %v1308 = vpop.permute.xlu0 %1307
        %1309 = vrot.lane.b32.xlu0 %v1302, 64
        %v1310 = vpop.permute.xlu0 %1309
        %v1313 = vmul.f32 %v1301, %v1308
        %v1314 = vmul.f32 %v1302, %v1310
        %1317 = vrot.lane.b32.xlu0 %v1313, 32
        %v1318 = vpop.permute.xlu0 %1317
        %1319 = vrot.lane.b32.xlu0 %v1314, 32
        %v1320 = vpop.permute.xlu0 %1319
        %v1323 = vadd.f32 %v1303, %v1318
        %v1324 = vadd.f32 %v1304, %v1320
        %v1325 = vtanh.pop %v1323
        %v1326 = vtanh.pop %v1324
        %1329 = vrot.lane.b32.xlu0 %v1325, 64
        %v1330 = vpop.permute.xlu0 %1329
        %1331 = vrot.lane.b32.xlu0 %v1326, 64
        %v1332 = vpop.permute.xlu0 %1331
        %v1335 = vmul.f32 %v1301, %v1330
        %v1336 = vmul.f32 %v1302, %v1332
        %1339 = vrot.lane.b32.xlu0 %v1335, 32
        %v1340 = vpop.permute.xlu0 %1339
        %1341 = vrot.lane.b32.xlu0 %v1336, 32
        %v1342 = vpop.permute.xlu0 %1341
        %s1345 = scalar_lea.vmem [#allocation3], 64
        %1346 = vst.msk [vmem:[%s1345] sm:$0xff] %vm647, %v1340
        %1347 = vst.msk [vmem:[%s1345 + $0x8] sm:$0xff] %vm647, %v1342
        %s1348 = scalar_lea.vmem [#allocation2], 80
        %v1349 = vld [vmem:[%s1348] sm:$0xff]
        %v1350 = vld [vmem:[%s1348 + $0x8] sm:$0xff]
        %v1351 = vsel %vm647, %v1340, 0
        %v1353 = vsel %vm647, %v1342, 0
        %1355 = vmatprep.subr.mxu0 0.0
        %1356 = vmatpush1.msra.mxu0 0.0
        %1357 = vmatprep.subr.mxu0 0.0
        %1358 = vmatpush1.msra.mxu0 0.0
        %1359 = vmatprep.subr.mxu0 0.0
        %1360 = vmatpush1.msra.mxu0 0.0
        %1361 = vmatprep.subr.mxu0 0.0
        %1362 = vmatpush1.msra.mxu0 0.0
        %1363 = vmatprep.subr.mxu0 0.0
        %1364 = vmatpush1.msra.mxu0 0.0
        %1365 = vmatprep.subr.mxu0 0.0
        %1366 = vmatpush1.msra.mxu0 0.0
        %1367 = vmatprep.subr.mxu0 0.0
        %1368 = vmatpush1.msra.mxu0 0.0
        %1369 = vmatprep.subr.mxu0 0.0
        %1370 = vmatpush1.msra.mxu0 0.0
        %1371 = vmatprep.subr.mxu0 0.0
        %1372 = vmatpush1.msra.mxu0 0.0
        %1373 = vmatprep.subr.mxu0 0.0
        %1374 = vmatpush1.msra.mxu0 0.0
        %1375 = vmatprep.subr.mxu0 0.0
        %1376 = vmatpush1.msra.mxu0 0.0
        %1377 = vmatprep.subr.mxu0 0.0
        %1378 = vmatpush1.msra.mxu0 0.0
        %1379 = vmatprep.subr.mxu0 0.0
        %1380 = vmatpush1.msra.mxu0 %v644
        %1381 = vmatprep.subr.mxu0 0.0
        %1382 = vmatpush1.msra.mxu0 %v643
        %1383 = vmatprep.subr.mxu0 0.0
        %1384 = vmatpush1.msra.mxu0 %v642
        %1385 = vmatprep.subr.mxu0 0.0
        %1386 = vmatpush1.msra.mxu0 %v641
        %1387 = vmatprep.subr.mxu0 0.0
        %1388 = vmatpush2.msra.mxu0 0.0
        %1389 = vmatprep.subr.mxu0 0.0
        %1390 = vmatpush2.msra.mxu0 0.0
        %1391 = vmatprep.subr.mxu0 0.0
        %1392 = vmatpush2.msra.mxu0 0.0
        %1393 = vmatprep.subr.mxu0 0.0
        %1394 = vmatpush2.msra.mxu0 0.0
        %1395 = vmatprep.subr.mxu0 0.0
        %1396 = vmatpush2.msra.mxu0 0.0
        %1397 = vmatprep.subr.mxu0 0.0
        %1398 = vmatpush2.msra.mxu0 0.0
        %1399 = vmatprep.subr.mxu0 0.0
        %1400 = vmatpush2.msra.mxu0 0.0
        %1401 = vmatprep.subr.mxu0 0.0
        %1402 = vmatpush2.msra.mxu0 0.0
        %1403 = vmatprep.subr.mxu0 0.0
        %1404 = vmatpush2.msra.mxu0 0.0
        %1405 = vmatprep.subr.mxu0 0.0
        %1406 = vmatpush2.msra.mxu0 0.0
        %1407 = vmatprep.subr.mxu0 0.0
        %1408 = vmatpush2.msra.mxu0 0.0
        %1409 = vmatprep.subr.mxu0 0.0
        %1410 = vmatpush2.msra.mxu0 0.0
        %1411 = vmatprep.subr.mxu0 0.0
        %1412 = vmatpush2.msra.mxu0 0.0
        %1413 = vmatprep.subr.mxu0 0.0
        %1414 = vmatpush2.msra.mxu0 0.0
        %1415 = vmatprep.subr.mxu0 0.0
        %1416 = vmatpush2.msra.mxu0 0.0
        %1417 = vmatprep.subr.mxu0 0.0
        %1418 = vmatpush2.msra.mxu0 0.0
        %1419 = vmatprep.mubr.f32.mxu0 0.0
        %1420 = vmatmul.mubr.f32.gmra.mxu0 %v1351
        %v1421 = vpop.f32.mrf.mxu0
        %v1422 = vadd.f32 0.0, %v1421
        %v1423 = vpop.f32.mrf.mxu0
        %1424 = vmatprep.mubr.f32.mxu0 0.0
        %1425 = vmatmul.mubr.f32.gmra.mxu0 %v1353
        %v1426 = vpop.f32.mrf.mxu0
        %v1427 = vadd.f32 0.0, %v1426
        %v1428 = vpop.f32.mrf.mxu0
        %1429 = vdwg.mxu0
        %v1430 = vadd.f32 %v1349, %v1422
        %v1431 = vadd.f32 %v1350, %v1427
        %v1432 = vmul.f32 %v1430, 0.5
        %v1433 = vmul.f32 %v1431, 0.5
        %v1434 = vtanh.pop %v1432
        %v1435 = vtanh.pop %v1433
        %v1436 = vmul.f32 %v1434, 0.5
        %v1437 = vmul.f32 %v1435, 0.5
        %v1438 = vadd.f32 %v1436, 0.5
        %v1439 = vadd.f32 %v1437, 0.5
        %v1440 = vtanh.pop %v1430
        %v1441 = vtanh.pop %v1431
        %v1442 = vsel %vm640, %v1440, %v1438
        %v1443 = vsel %vm640, %v1441, %v1439
        %v1444 = vmul.f32 %v1442, %v1323
        %v1445 = vmul.f32 %v1443, %v1324
        %1448 = vrot.lane.b32.xlu0 %v1442, 64
        %v1449 = vpop.permute.xlu0 %1448
        %1450 = vrot.lane.b32.xlu0 %v1443, 64
        %v1451 = vpop.permute.xlu0 %1450
        %v1454 = vmul.f32 %v1442, %v1449
        %v1455 = vmul.f32 %v1443, %v1451
        %1458 = vrot.lane.b32.xlu0 %v1454, 32
        %v1459 = vpop.permute.xlu0 %1458
        %1460 = vrot.lane.b32.xlu0 %v1455, 32
        %v1461 = vpop.permute.xlu0 %1460
        %v1464 = vadd.f32 %v1444, %v1459
        %v1465 = vadd.f32 %v1445, %v1461
        %v1466 = vtanh.pop %v1464
        %v1467 = vtanh.pop %v1465
        %1470 = vrot.lane.b32.xlu0 %v1466, 64
        %v1471 = vpop.permute.xlu0 %1470
        %1472 = vrot.lane.b32.xlu0 %v1467, 64
        %v1473 = vpop.permute.xlu0 %1472
        %v1476 = vmul.f32 %v1442, %v1471
        %v1477 = vmul.f32 %v1443, %v1473
        %1480 = vrot.lane.b32.xlu0 %v1476, 32
        %v1481 = vpop.permute.xlu0 %1480
        %1482 = vrot.lane.b32.xlu0 %v1477, 32
        %v1483 = vpop.permute.xlu0 %1482
        %s1486 = scalar_lea.vmem [#allocation3], 80
        %1487 = vst.msk [vmem:[%s1486] sm:$0xff] %vm647, %v1481
        %1488 = vst.msk [vmem:[%s1486 + $0x8] sm:$0xff] %vm647, %v1483
        %s1489 = scalar_lea.vmem [#allocation2], 96
        %v1490 = vld [vmem:[%s1489] sm:$0xff]
        %v1491 = vld [vmem:[%s1489 + $0x8] sm:$0xff]
        %v1492 = vsel %vm647, %v1481, 0
        %v1494 = vsel %vm647, %v1483, 0
        %1496 = vmatprep.subr.mxu0 0.0
        %1497 = vmatpush1.msra.mxu0 0.0
        %1498 = vmatprep.subr.mxu0 0.0
        %1499 = vmatpush1.msra.mxu0 0.0
        %1500 = vmatprep.subr.mxu0 0.0
        %1501 = vmatpush1.msra.mxu0 0.0
        %1502 = vmatprep.subr.mxu0 0.0
        %1503 = vmatpush1.msra.mxu0 0.0
        %1504 = vmatprep.subr.mxu0 0.0
        %1505 = vmatpush1.msra.mxu0 0.0
        %1506 = vmatprep.subr.mxu0 0.0
        %1507 = vmatpush1.msra.mxu0 0.0
        %1508 = vmatprep.subr.mxu0 0.0
        %1509 = vmatpush1.msra.mxu0 0.0
        %1510 = vmatprep.subr.mxu0 0.0
        %1511 = vmatpush1.msra.mxu0 0.0
        %1512 = vmatprep.subr.mxu0 0.0
        %1513 = vmatpush1.msra.mxu0 0.0
        %1514 = vmatprep.subr.mxu0 0.0
        %1515 = vmatpush1.msra.mxu0 0.0
        %1516 = vmatprep.subr.mxu0 0.0
        %1517 = vmatpush1.msra.mxu0 0.0
        %1518 = vmatprep.subr.mxu0 0.0
        %1519 = vmatpush1.msra.mxu0 0.0
        %1520 = vmatprep.subr.mxu0 0.0
        %1521 = vmatpush1.msra.mxu0 %v644
        %1522 = vmatprep.subr.mxu0 0.0
        %1523 = vmatpush1.msra.mxu0 %v643
        %1524 = vmatprep.subr.mxu0 0.0
        %1525 = vmatpush1.msra.mxu0 %v642
        %1526 = vmatprep.subr.mxu0 0.0
        %1527 = vmatpush1.msra.mxu0 %v641
        %1528 = vmatprep.subr.mxu0 0.0
        %1529 = vmatpush2.msra.mxu0 0.0
        %1530 = vmatprep.subr.mxu0 0.0
        %1531 = vmatpush2.msra.mxu0 0.0
        %1532 = vmatprep.subr.mxu0 0.0
        %1533 = vmatpush2.msra.mxu0 0.0
        %1534 = vmatprep.subr.mxu0 0.0
        %1535 = vmatpush2.msra.mxu0 0.0
        %1536 = vmatprep.subr.mxu0 0.0
        %1537 = vmatpush2.msra.mxu0 0.0
        %1538 = vmatprep.subr.mxu0 0.0
        %1539 = vmatpush2.msra.mxu0 0.0
        %1540 = vmatprep.subr.mxu0 0.0
        %1541 = vmatpush2.msra.mxu0 0.0
        %1542 = vmatprep.subr.mxu0 0.0
        %1543 = vmatpush2.msra.mxu0 0.0
        %1544 = vmatprep.subr.mxu0 0.0
        %1545 = vmatpush2.msra.mxu0 0.0
        %1546 = vmatprep.subr.mxu0 0.0
        %1547 = vmatpush2.msra.mxu0 0.0
        %1548 = vmatprep.subr.mxu0 0.0
        %1549 = vmatpush2.msra.mxu0 0.0
        %1550 = vmatprep.subr.mxu0 0.0
        %1551 = vmatpush2.msra.mxu0 0.0
        %1552 = vmatprep.subr.mxu0 0.0
        %1553 = vmatpush2.msra.mxu0 0.0
        %1554 = vmatprep.subr.mxu0 0.0
        %1555 = vmatpush2.msra.mxu0 0.0
        %1556 = vmatprep.subr.mxu0 0.0
        %1557 = vmatpush2.msra.mxu0 0.0
        %1558 = vmatprep.subr.mxu0 0.0
        %1559 = vmatpush2.msra.mxu0 0.0
        %1560 = vmatprep.mubr.f32.mxu0 0.0
        %1561 = vmatmul.mubr.f32.gmra.mxu0 %v1492
        %v1562 = vpop.f32.mrf.mxu0
        %v1563 = vadd.f32 0.0, %v1562
        %v1564 = vpop.f32.mrf.mxu0
        %1565 = vmatprep.mubr.f32.mxu0 0.0
        %1566 = vmatmul.mubr.f32.gmra.mxu0 %v1494
        %v1567 = vpop.f32.mrf.mxu0
        %v1568 = vadd.f32 0.0, %v1567
        %v1569 = vpop.f32.mrf.mxu0
        %1570 = vdwg.mxu0
        %v1571 = vadd.f32 %v1490, %v1563
        %v1572 = vadd.f32 %v1491, %v1568
        %v1573 = vmul.f32 %v1571, 0.5
        %v1574 = vmul.f32 %v1572, 0.5
        %v1575 = vtanh.pop %v1573
        %v1576 = vtanh.pop %v1574
        %v1577 = vmul.f32 %v1575, 0.5
        %v1578 = vmul.f32 %v1576, 0.5
        %v1579 = vadd.f32 %v1577, 0.5
        %v1580 = vadd.f32 %v1578, 0.5
        %v1581 = vtanh.pop %v1571
        %v1582 = vtanh.pop %v1572
        %v1583 = vsel %vm640, %v1581, %v1579
        %v1584 = vsel %vm640, %v1582, %v1580
        %v1585 = vmul.f32 %v1583, %v1464
        %v1586 = vmul.f32 %v1584, %v1465
        %1589 = vrot.lane.b32.xlu0 %v1583, 64
        %v1590 = vpop.permute.xlu0 %1589
        %1591 = vrot.lane.b32.xlu0 %v1584, 64
        %v1592 = vpop.permute.xlu0 %1591
        %v1595 = vmul.f32 %v1583, %v1590
        %v1596 = vmul.f32 %v1584, %v1592
        %1599 = vrot.lane.b32.xlu0 %v1595, 32
        %v1600 = vpop.permute.xlu0 %1599
        %1601 = vrot.lane.b32.xlu0 %v1596, 32
        %v1602 = vpop.permute.xlu0 %1601
        %v1605 = vadd.f32 %v1585, %v1600
        %v1606 = vadd.f32 %v1586, %v1602
        %v1607 = vtanh.pop %v1605
        %v1608 = vtanh.pop %v1606
        %1611 = vrot.lane.b32.xlu0 %v1607, 64
        %v1612 = vpop.permute.xlu0 %1611
        %1613 = vrot.lane.b32.xlu0 %v1608, 64
        %v1614 = vpop.permute.xlu0 %1613
        %v1617 = vmul.f32 %v1583, %v1612
        %v1618 = vmul.f32 %v1584, %v1614
        %1621 = vrot.lane.b32.xlu0 %v1617, 32
        %v1622 = vpop.permute.xlu0 %1621
        %1623 = vrot.lane.b32.xlu0 %v1618, 32
        %v1624 = vpop.permute.xlu0 %1623
        %s1627 = scalar_lea.vmem [#allocation3], 96
        %1628 = vst.msk [vmem:[%s1627] sm:$0xff] %vm647, %v1622
        %1629 = vst.msk [vmem:[%s1627 + $0x8] sm:$0xff] %vm647, %v1624
        %s1630 = scalar_lea.vmem [#allocation2], 112
        %v1631 = vld [vmem:[%s1630] sm:$0xff]
        %v1632 = vld [vmem:[%s1630 + $0x8] sm:$0xff]
        %v1633 = vsel %vm647, %v1622, 0
        %v1635 = vsel %vm647, %v1624, 0
        %1637 = vmatprep.subr.mxu0 0.0
        %1638 = vmatpush1.msra.mxu0 0.0
        %1639 = vmatprep.subr.mxu0 0.0
        %1640 = vmatpush1.msra.mxu0 0.0
        %1641 = vmatprep.subr.mxu0 0.0
        %1642 = vmatpush1.msra.mxu0 0.0
        %1643 = vmatprep.subr.mxu0 0.0
        %1644 = vmatpush1.msra.mxu0 0.0
        %1645 = vmatprep.subr.mxu0 0.0
        %1646 = vmatpush1.msra.mxu0 0.0
        %1647 = vmatprep.subr.mxu0 0.0
        %1648 = vmatpush1.msra.mxu0 0.0
        %1649 = vmatprep.subr.mxu0 0.0
        %1650 = vmatpush1.msra.mxu0 0.0
        %1651 = vmatprep.subr.mxu0 0.0
        %1652 = vmatpush1.msra.mxu0 0.0
        %1653 = vmatprep.subr.mxu0 0.0
        %1654 = vmatpush1.msra.mxu0 0.0
        %1655 = vmatprep.subr.mxu0 0.0
        %1656 = vmatpush1.msra.mxu0 0.0
        %1657 = vmatprep.subr.mxu0 0.0
        %1658 = vmatpush1.msra.mxu0 0.0
        %1659 = vmatprep.subr.mxu0 0.0
        %1660 = vmatpush1.msra.mxu0 0.0
        %1661 = vmatprep.subr.mxu0 0.0
        %1662 = vmatpush1.msra.mxu0 %v644
        %1663 = vmatprep.subr.mxu0 0.0
        %1664 = vmatpush1.msra.mxu0 %v643
        %1665 = vmatprep.subr.mxu0 0.0
        %1666 = vmatpush1.msra.mxu0 %v642
        %1667 = vmatprep.subr.mxu0 0.0
        %1668 = vmatpush1.msra.mxu0 %v641
        %1669 = vmatprep.subr.mxu0 0.0
        %1670 = vmatpush2.msra.mxu0 0.0
        %1671 = vmatprep.subr.mxu0 0.0
        %1672 = vmatpush2.msra.mxu0 0.0
        %1673 = vmatprep.subr.mxu0 0.0
        %1674 = vmatpush2.msra.mxu0 0.0
        %1675 = vmatprep.subr.mxu0 0.0
        %1676 = vmatpush2.msra.mxu0 0.0
        %1677 = vmatprep.subr.mxu0 0.0
        %1678 = vmatpush2.msra.mxu0 0.0
        %1679 = vmatprep.subr.mxu0 0.0
        %1680 = vmatpush2.msra.mxu0 0.0
        %1681 = vmatprep.subr.mxu0 0.0
        %1682 = vmatpush2.msra.mxu0 0.0
        %1683 = vmatprep.subr.mxu0 0.0
        %1684 = vmatpush2.msra.mxu0 0.0
        %1685 = vmatprep.subr.mxu0 0.0
        %1686 = vmatpush2.msra.mxu0 0.0
        %1687 = vmatprep.subr.mxu0 0.0
        %1688 = vmatpush2.msra.mxu0 0.0
        %1689 = vmatprep.subr.mxu0 0.0
        %1690 = vmatpush2.msra.mxu0 0.0
        %1691 = vmatprep.subr.mxu0 0.0
        %1692 = vmatpush2.msra.mxu0 0.0
        %1693 = vmatprep.subr.mxu0 0.0
        %1694 = vmatpush2.msra.mxu0 0.0
        %1695 = vmatprep.subr.mxu0 0.0
        %1696 = vmatpush2.msra.mxu0 0.0
        %1697 = vmatprep.subr.mxu0 0.0
        %1698 = vmatpush2.msra.mxu0 0.0
        %1699 = vmatprep.subr.mxu0 0.0
        %1700 = vmatpush2.msra.mxu0 0.0
        %1701 = vmatprep.mubr.f32.mxu0 0.0
        %1702 = vmatmul.mubr.f32.gmra.mxu0 %v1633
        %v1703 = vpop.f32.mrf.mxu0
        %v1704 = vadd.f32 0.0, %v1703
        %v1705 = vpop.f32.mrf.mxu0
        %1706 = vmatprep.mubr.f32.mxu0 0.0
        %1707 = vmatmul.mubr.f32.gmra.mxu0 %v1635
        %v1708 = vpop.f32.mrf.mxu0
        %v1709 = vadd.f32 0.0, %v1708
        %v1710 = vpop.f32.mrf.mxu0
        %1711 = vdwg.mxu0
        %v1712 = vadd.f32 %v1631, %v1704
        %v1713 = vadd.f32 %v1632, %v1709
        %v1714 = vmul.f32 %v1712, 0.5
        %v1715 = vmul.f32 %v1713, 0.5
        %v1716 = vtanh.pop %v1714
        %v1717 = vtanh.pop %v1715
        %v1718 = vmul.f32 %v1716, 0.5
        %v1719 = vmul.f32 %v1717, 0.5
        %v1720 = vadd.f32 %v1718, 0.5
        %v1721 = vadd.f32 %v1719, 0.5
        %v1722 = vtanh.pop %v1712
        %v1723 = vtanh.pop %v1713
        %v1724 = vsel %vm640, %v1722, %v1720
        %v1725 = vsel %vm640, %v1723, %v1721
        %v1726 = vmul.f32 %v1724, %v1605
        %v1727 = vmul.f32 %v1725, %v1606
        %1730 = vrot.lane.b32.xlu0 %v1724, 64
        %v1731 = vpop.permute.xlu0 %1730
        %1732 = vrot.lane.b32.xlu0 %v1725, 64
        %v1733 = vpop.permute.xlu0 %1732
        %v1736 = vmul.f32 %v1724, %v1731
        %v1737 = vmul.f32 %v1725, %v1733
        %1740 = vrot.lane.b32.xlu0 %v1736, 32
        %v1741 = vpop.permute.xlu0 %1740
        %1742 = vrot.lane.b32.xlu0 %v1737, 32
        %v1743 = vpop.permute.xlu0 %1742
        %v1746 = vadd.f32 %v1726, %v1741
        %v1747 = vadd.f32 %v1727, %v1743
        %v1748 = vtanh.pop %v1746
        %v1749 = vtanh.pop %v1747
        %1752 = vrot.lane.b32.xlu0 %v1748, 64
        %v1753 = vpop.permute.xlu0 %1752
        %1754 = vrot.lane.b32.xlu0 %v1749, 64
        %v1755 = vpop.permute.xlu0 %1754
        %v1758 = vmul.f32 %v1724, %v1753
        %v1759 = vmul.f32 %v1725, %v1755
        %1762 = vrot.lane.b32.xlu0 %v1758, 32
        %v1763 = vpop.permute.xlu0 %1762
        %1764 = vrot.lane.b32.xlu0 %v1759, 32
        %v1765 = vpop.permute.xlu0 %1764
        %s1768 = scalar_lea.vmem [#allocation3], 112
        %1769 = vst.msk [vmem:[%s1768] sm:$0xff] %vm647, %v1763
        %1770 = vst.msk [vmem:[%s1768 + $0x8] sm:$0xff] %vm647, %v1765
        %v1771 = vld [vmem:[#allocation3] sm:$0xff]
        %v1772 = vld [vmem:[#allocation3 + $0x8] sm:$0xff]
        %v1773 = vld [vmem:[#allocation3 + $0x10] sm:$0xff]
        %v1774 = vld [vmem:[#allocation3 + $0x18] sm:$0xff]
        %v1775 = vld [vmem:[#allocation3 + $0x20] sm:$0xff]
        %v1776 = vld [vmem:[#allocation3 + $0x28] sm:$0xff]
        %v1777 = vld [vmem:[#allocation3 + $0x30] sm:$0xff]
        %v1778 = vld [vmem:[#allocation3 + $0x38] sm:$0xff]
        %v1779 = vld [vmem:[#allocation3 + $0x40] sm:$0xff]
        %v1780 = vld [vmem:[#allocation3 + $0x48] sm:$0xff]
        %v1781 = vld [vmem:[#allocation3 + $0x50] sm:$0xff]
        %v1782 = vld [vmem:[#allocation3 + $0x58] sm:$0xff]
        %v1783 = vld [vmem:[#allocation3 + $0x60] sm:$0xff]
        %v1784 = vld [vmem:[#allocation3 + $0x68] sm:$0xff]
        %v1785 = vld [vmem:[#allocation3 + $0x70] sm:$0xff]
        %v1786 = vld [vmem:[#allocation3 + $0x78] sm:$0xff]
        %v1787 = vld [vmem:[%s4] sm:$0xff]
        %v1788 = vld [vmem:[%s4 + $0x8] sm:$0xff]
        %v1789 = vld [vmem:[%s4 + $0x10] sm:$0xff]
        %v1790 = vld [vmem:[%s4 + $0x18] sm:$0xff]
        %v1791 = vld [vmem:[%s5] sm:$0x1]
        %v1793 = vlaneseq
        %v1794 = vshrl.u32 %v1793, 7
        %v1795 = vsub.s32 0, %v1794
        %v1796 = vrot.slane %v1791, %v1795
        %v1799 = vsel %vm647, %v1771, 0
        %v1802 = vsel %vm647, %v1772, 0
        %v1805 = vsel %vm647, %v1773, 0
        %v1808 = vsel %vm647, %v1774, 0
        %v1811 = vsel %vm647, %v1775, 0
        %v1814 = vsel %vm647, %v1776, 0
        %v1817 = vsel %vm647, %v1777, 0
        %v1820 = vsel %vm647, %v1778, 0
        %v1823 = vsel %vm647, %v1779, 0
        %v1826 = vsel %vm647, %v1780, 0
        %v1829 = vsel %vm647, %v1781, 0
        %v1832 = vsel %vm647, %v1782, 0
        %v1835 = vsel %vm647, %v1783, 0
        %v1838 = vsel %vm647, %v1784, 0
        %v1841 = vsel %vm647, %v1785, 0
        %v1844 = vsel %vm647, %v1786, 0
        %1846 = vmatprep.subr.mxu0 0.0
        %1847 = vmatpush1.msra.mxu0 0.0
        %1848 = vmatprep.subr.mxu0 0.0
        %1849 = vmatpush1.msra.mxu0 0.0
        %1850 = vmatprep.subr.mxu0 0.0
        %1851 = vmatpush1.msra.mxu0 0.0
        %1852 = vmatprep.subr.mxu0 0.0
        %1853 = vmatpush1.msra.mxu0 0.0
        %1854 = vmatprep.subr.mxu0 0.0
        %1855 = vmatpush1.msra.mxu0 0.0
        %1856 = vmatprep.subr.mxu0 0.0
        %1857 = vmatpush1.msra.mxu0 0.0
        %1858 = vmatprep.subr.mxu0 0.0
        %1859 = vmatpush1.msra.mxu0 0.0
        %1860 = vmatprep.subr.mxu0 0.0
        %1861 = vmatpush1.msra.mxu0 0.0
        %1862 = vmatprep.subr.mxu0 0.0
        %1863 = vmatpush1.msra.mxu0 0.0
        %1864 = vmatprep.subr.mxu0 0.0
        %1865 = vmatpush1.msra.mxu0 0.0
        %1866 = vmatprep.subr.mxu0 0.0
        %1867 = vmatpush1.msra.mxu0 0.0
        %1868 = vmatprep.subr.mxu0 0.0
        %1869 = vmatpush1.msra.mxu0 0.0
        %1870 = vmatprep.subr.mxu0 0.0
        %1871 = vmatpush1.msra.mxu0 %v1790
        %1872 = vmatprep.subr.mxu0 0.0
        %1873 = vmatpush1.msra.mxu0 %v1789
        %1874 = vmatprep.subr.mxu0 0.0
        %1875 = vmatpush1.msra.mxu0 %v1788
        %1876 = vmatprep.subr.mxu0 0.0
        %1877 = vmatpush1.msra.mxu0 %v1787
        %1878 = vmatprep.subr.mxu0 0.0
        %1879 = vmatpush2.msra.mxu0 0.0
        %1880 = vmatprep.subr.mxu0 0.0
        %1881 = vmatpush2.msra.mxu0 0.0
        %1882 = vmatprep.subr.mxu0 0.0
        %1883 = vmatpush2.msra.mxu0 0.0
        %1884 = vmatprep.subr.mxu0 0.0
        %1885 = vmatpush2.msra.mxu0 0.0
        %1886 = vmatprep.subr.mxu0 0.0
        %1887 = vmatpush2.msra.mxu0 0.0
        %1888 = vmatprep.subr.mxu0 0.0
        %1889 = vmatpush2.msra.mxu0 0.0
        %1890 = vmatprep.subr.mxu0 0.0
        %1891 = vmatpush2.msra.mxu0 0.0
        %1892 = vmatprep.subr.mxu0 0.0
        %1893 = vmatpush2.msra.mxu0 0.0
        %1894 = vmatprep.subr.mxu0 0.0
        %1895 = vmatpush2.msra.mxu0 0.0
        %1896 = vmatprep.subr.mxu0 0.0
        %1897 = vmatpush2.msra.mxu0 0.0
        %1898 = vmatprep.subr.mxu0 0.0
        %1899 = vmatpush2.msra.mxu0 0.0
        %1900 = vmatprep.subr.mxu0 0.0
        %1901 = vmatpush2.msra.mxu0 0.0
        %1902 = vmatprep.subr.mxu0 0.0
        %1903 = vmatpush2.msra.mxu0 0.0
        %1904 = vmatprep.subr.mxu0 0.0
        %1905 = vmatpush2.msra.mxu0 0.0
        %1906 = vmatprep.subr.mxu0 0.0
        %1907 = vmatpush2.msra.mxu0 0.0
        %1908 = vmatprep.subr.mxu0 0.0
        %1909 = vmatpush2.msra.mxu0 0.0
        %1910 = vmatprep.mubr.f32.mxu0 0.0
        %1911 = vmatmul.mubr.f32.gmra.mxu0 %v1799
        %v1912 = vpop.f32.mrf.mxu0
        %v1913 = vadd.f32 %v1796, %v1912
        %v1914 = vpop.f32.mrf.mxu0
        %1915 = vmatprep.mubr.f32.mxu0 0.0
        %1916 = vmatmul.mubr.f32.gmra.mxu0 %v1802
        %v1917 = vpop.f32.mrf.mxu0
        %v1918 = vadd.f32 %v1796, %v1917
        %v1919 = vpop.f32.mrf.mxu0
        %1920 = vmatprep.mubr.f32.mxu0 0.0
        %1921 = vmatmul.mubr.f32.gmra.mxu0 %v1805
        %v1922 = vpop.f32.mrf.mxu0
        %v1923 = vadd.f32 %v1796, %v1922
        %v1924 = vpop.f32.mrf.mxu0
        %1925 = vmatprep.mubr.f32.mxu0 0.0
        %1926 = vmatmul.mubr.f32.gmra.mxu0 %v1808
        %v1927 = vpop.f32.mrf.mxu0
        %v1928 = vadd.f32 %v1796, %v1927
        %v1929 = vpop.f32.mrf.mxu0
        %1930 = vmatprep.mubr.f32.mxu0 0.0
        %1931 = vmatmul.mubr.f32.gmra.mxu0 %v1811
        %v1932 = vpop.f32.mrf.mxu0
        %v1933 = vadd.f32 %v1796, %v1932
        %v1934 = vpop.f32.mrf.mxu0
        %1935 = vmatprep.mubr.f32.mxu0 0.0
        %1936 = vmatmul.mubr.f32.gmra.mxu0 %v1814
        %v1937 = vpop.f32.mrf.mxu0
        %v1938 = vadd.f32 %v1796, %v1937
        %v1939 = vpop.f32.mrf.mxu0
        %1940 = vmatprep.mubr.f32.mxu0 0.0
        %1941 = vmatmul.mubr.f32.gmra.mxu0 %v1817
        %v1942 = vpop.f32.mrf.mxu0
        %v1943 = vadd.f32 %v1796, %v1942
        %v1944 = vpop.f32.mrf.mxu0
        %1945 = vmatprep.mubr.f32.mxu0 0.0
        %1946 = vmatmul.mubr.f32.gmra.mxu0 %v1820
        %v1947 = vpop.f32.mrf.mxu0
        %v1948 = vadd.f32 %v1796, %v1947
        %v1949 = vpop.f32.mrf.mxu0
        %1950 = vmatprep.mubr.f32.mxu0 0.0
        %1951 = vmatmul.mubr.f32.gmra.mxu0 %v1823
        %v1952 = vpop.f32.mrf.mxu0
        %v1953 = vadd.f32 %v1796, %v1952
        %v1954 = vpop.f32.mrf.mxu0
        %1955 = vmatprep.mubr.f32.mxu0 0.0
        %1956 = vmatmul.mubr.f32.gmra.mxu0 %v1826
        %v1957 = vpop.f32.mrf.mxu0
        %v1958 = vadd.f32 %v1796, %v1957
        %v1959 = vpop.f32.mrf.mxu0
        %1960 = vmatprep.mubr.f32.mxu0 0.0
        %1961 = vmatmul.mubr.f32.gmra.mxu0 %v1829
        %v1962 = vpop.f32.mrf.mxu0
        %v1963 = vadd.f32 %v1796, %v1962
        %v1964 = vpop.f32.mrf.mxu0
        %1965 = vmatprep.mubr.f32.mxu0 0.0
        %1966 = vmatmul.mubr.f32.gmra.mxu0 %v1832
        %v1967 = vpop.f32.mrf.mxu0
        %v1968 = vadd.f32 %v1796, %v1967
        %v1969 = vpop.f32.mrf.mxu0
        %1970 = vmatprep.mubr.f32.mxu0 0.0
        %1971 = vmatmul.mubr.f32.gmra.mxu0 %v1835
        %v1972 = vpop.f32.mrf.mxu0
        %v1973 = vadd.f32 %v1796, %v1972
        %v1974 = vpop.f32.mrf.mxu0
        %1975 = vmatprep.mubr.f32.mxu0 0.0
        %1976 = vmatmul.mubr.f32.gmra.mxu0 %v1838
        %v1977 = vpop.f32.mrf.mxu0
        %v1978 = vadd.f32 %v1796, %v1977
        %v1979 = vpop.f32.mrf.mxu0
        %1980 = vmatprep.mubr.f32.mxu0 0.0
        %1981 = vmatmul.mubr.f32.gmra.mxu0 %v1841
        %v1982 = vpop.f32.mrf.mxu0
        %v1983 = vadd.f32 %v1796, %v1982
        %v1984 = vpop.f32.mrf.mxu0
        %1985 = vmatprep.mubr.f32.mxu0 0.0
        %1986 = vmatmul.mubr.f32.gmra.mxu0 %v1844
        %v1987 = vpop.f32.mrf.mxu0
        %v1988 = vadd.f32 %v1796, %v1987
        %v1989 = vpop.f32.mrf.mxu0
        %1990 = vdwg.mxu0
        %v1991 = vld [vmem:[%s6] sm:$0xf]
        %v1992 = vld [vmem:[%s7] sm:$0x1]
        %v1994 = vlaneseq
        %v1995 = vshrl.u32 %v1994, 7
        %v1996 = vsub.s32 0, %v1995
        %v1997 = vrot.slane %v1992, %v1996
        %v2000 = vsel %vm422, %v1913, 0
        %v2003 = vsel %vm422, %v1918, 0
        %v2006 = vsel %vm422, %v1923, 0
        %v2009 = vsel %vm422, %v1928, 0
        %v2012 = vsel %vm422, %v1933, 0
        %v2015 = vsel %vm422, %v1938, 0
        %v2018 = vsel %vm422, %v1943, 0
        %v2021 = vsel %vm422, %v1948, 0
        %v2024 = vsel %vm422, %v1953, 0
        %v2027 = vsel %vm422, %v1958, 0
        %v2030 = vsel %vm422, %v1963, 0
        %v2033 = vsel %vm422, %v1968, 0
        %v2036 = vsel %vm422, %v1973, 0
        %v2039 = vsel %vm422, %v1978, 0
        %v2042 = vsel %vm422, %v1983, 0
        %v2045 = vsel %vm422, %v1988, 0
        %v2048 = vsel %vm471, %v1991, 0
        %2050 = vmatprep.subr.mxu0 0.0
        %2051 = vmatpush1.msra.mxu0 0.0
        %2052 = vmatprep.subr.mxu0 0.0
        %2053 = vmatpush1.msra.mxu0 0.0
        %2054 = vmatprep.subr.mxu0 0.0
        %2055 = vmatpush1.msra.mxu0 0.0
        %2056 = vmatprep.subr.mxu0 0.0
        %2057 = vmatpush1.msra.mxu0 0.0
        %2058 = vmatprep.subr.mxu0 0.0
        %2059 = vmatpush1.msra.mxu0 0.0
        %2060 = vmatprep.subr.mxu0 0.0
        %2061 = vmatpush1.msra.mxu0 0.0
        %2062 = vmatprep.subr.mxu0 0.0
        %2063 = vmatpush1.msra.mxu0 0.0
        %2064 = vmatprep.subr.mxu0 0.0
        %2065 = vmatpush1.msra.mxu0 0.0
        %2066 = vmatprep.subr.mxu0 0.0
        %2067 = vmatpush1.msra.mxu0 0.0
        %2068 = vmatprep.subr.mxu0 0.0
        %2069 = vmatpush1.msra.mxu0 0.0
        %2070 = vmatprep.subr.mxu0 0.0
        %2071 = vmatpush1.msra.mxu0 0.0
        %2072 = vmatprep.subr.mxu0 0.0
        %2073 = vmatpush1.msra.mxu0 0.0
        %2074 = vmatprep.subr.mxu0 0.0
        %2075 = vmatpush1.msra.mxu0 0.0
        %2076 = vmatprep.subr.mxu0 0.0
        %2077 = vmatpush1.msra.mxu0 0.0
        %2078 = vmatprep.subr.mxu0 0.0
        %2079 = vmatpush1.msra.mxu0 0.0
        %2080 = vmatprep.subr.mxu0 0.0
        %2081 = vmatpush1.msra.mxu0 %v2048
        %2082 = vmatprep.subr.mxu0 0.0
        %2083 = vmatpush2.msra.mxu0 0.0
        %2084 = vmatprep.subr.mxu0 0.0
        %2085 = vmatpush2.msra.mxu0 0.0
        %2086 = vmatprep.subr.mxu0 0.0
        %2087 = vmatpush2.msra.mxu0 0.0
        %2088 = vmatprep.subr.mxu0 0.0
        %2089 = vmatpush2.msra.mxu0 0.0
        %2090 = vmatprep.subr.mxu0 0.0
        %2091 = vmatpush2.msra.mxu0 0.0
        %2092 = vmatprep.subr.mxu0 0.0
        %2093 = vmatpush2.msra.mxu0 0.0
        %2094 = vmatprep.subr.mxu0 0.0
        %2095 = vmatpush2.msra.mxu0 0.0
        %2096 = vmatprep.subr.mxu0 0.0
        %2097 = vmatpush2.msra.mxu0 0.0
        %2098 = vmatprep.subr.mxu0 0.0
        %2099 = vmatpush2.msra.mxu0 0.0
        %2100 = vmatprep.subr.mxu0 0.0
        %2101 = vmatpush2.msra.mxu0 0.0
        %2102 = vmatprep.subr.mxu0 0.0
        %2103 = vmatpush2.msra.mxu0 0.0
        %2104 = vmatprep.subr.mxu0 0.0
        %2105 = vmatpush2.msra.mxu0 0.0
        %2106 = vmatprep.subr.mxu0 0.0
        %2107 = vmatpush2.msra.mxu0 0.0
        %2108 = vmatprep.subr.mxu0 0.0
        %2109 = vmatpush2.msra.mxu0 0.0
        %2110 = vmatprep.subr.mxu0 0.0
        %2111 = vmatpush2.msra.mxu0 0.0
        %2112 = vmatprep.subr.mxu0 0.0
        %2113 = vmatpush2.msra.mxu0 0.0
        %2114 = vmatprep.mubr.f32.mxu0 0.0
        %2115 = vmatmul.mubr.f32.gmra.mxu0 %v2000
        %v2116 = vpop.f32.mrf.mxu0
        %v2117 = vadd.f32 %v1997, %v2116
        %v2118 = vpop.f32.mrf.mxu0
        %2119 = vmatprep.mubr.f32.mxu0 0.0
        %2120 = vmatmul.mubr.f32.gmra.mxu0 %v2003
        %v2121 = vpop.f32.mrf.mxu0
        %v2122 = vadd.f32 %v1997, %v2121
        %v2123 = vpop.f32.mrf.mxu0
        %2124 = vmatprep.mubr.f32.mxu0 0.0
        %2125 = vmatmul.mubr.f32.gmra.mxu0 %v2006
        %v2126 = vpop.f32.mrf.mxu0
        %v2127 = vadd.f32 %v1997, %v2126
        %v2128 = vpop.f32.mrf.mxu0
        %2129 = vmatprep.mubr.f32.mxu0 0.0
        %2130 = vmatmul.mubr.f32.gmra.mxu0 %v2009
        %v2131 = vpop.f32.mrf.mxu0
        %v2132 = vadd.f32 %v1997, %v2131
        %v2133 = vpop.f32.mrf.mxu0
        %2134 = vmatprep.mubr.f32.mxu0 0.0
        %2135 = vmatmul.mubr.f32.gmra.mxu0 %v2012
        %v2136 = vpop.f32.mrf.mxu0
        %v2137 = vadd.f32 %v1997, %v2136
        %v2138 = vpop.f32.mrf.mxu0
        %2139 = vmatprep.mubr.f32.mxu0 0.0
        %2140 = vmatmul.mubr.f32.gmra.mxu0 %v2015
        %v2141 = vpop.f32.mrf.mxu0
        %v2142 = vadd.f32 %v1997, %v2141
        %v2143 = vpop.f32.mrf.mxu0
        %2144 = vmatprep.mubr.f32.mxu0 0.0
        %2145 = vmatmul.mubr.f32.gmra.mxu0 %v2018
        %v2146 = vpop.f32.mrf.mxu0
        %v2147 = vadd.f32 %v1997, %v2146
        %v2148 = vpop.f32.mrf.mxu0
        %2149 = vmatprep.mubr.f32.mxu0 0.0
        %2150 = vmatmul.mubr.f32.gmra.mxu0 %v2021
        %v2151 = vpop.f32.mrf.mxu0
        %v2152 = vadd.f32 %v1997, %v2151
        %v2153 = vpop.f32.mrf.mxu0
        %2154 = vmatprep.mubr.f32.mxu0 0.0
        %2155 = vmatmul.mubr.f32.gmra.mxu0 %v2024
        %v2156 = vpop.f32.mrf.mxu0
        %v2157 = vadd.f32 %v1997, %v2156
        %v2158 = vpop.f32.mrf.mxu0
        %2159 = vmatprep.mubr.f32.mxu0 0.0
        %2160 = vmatmul.mubr.f32.gmra.mxu0 %v2027
        %v2161 = vpop.f32.mrf.mxu0
        %v2162 = vadd.f32 %v1997, %v2161
        %v2163 = vpop.f32.mrf.mxu0
        %2164 = vmatprep.mubr.f32.mxu0 0.0
        %2165 = vmatmul.mubr.f32.gmra.mxu0 %v2030
        %v2166 = vpop.f32.mrf.mxu0
        %v2167 = vadd.f32 %v1997, %v2166
        %v2168 = vpop.f32.mrf.mxu0
        %2169 = vmatprep.mubr.f32.mxu0 0.0
        %2170 = vmatmul.mubr.f32.gmra.mxu0 %v2033
        %v2171 = vpop.f32.mrf.mxu0
        %v2172 = vadd.f32 %v1997, %v2171
        %v2173 = vpop.f32.mrf.mxu0
        %2174 = vmatprep.mubr.f32.mxu0 0.0
        %2175 = vmatmul.mubr.f32.gmra.mxu0 %v2036
        %v2176 = vpop.f32.mrf.mxu0
        %v2177 = vadd.f32 %v1997, %v2176
        %v2178 = vpop.f32.mrf.mxu0
        %2179 = vmatprep.mubr.f32.mxu0 0.0
        %2180 = vmatmul.mubr.f32.gmra.mxu0 %v2039
        %v2181 = vpop.f32.mrf.mxu0
        %v2182 = vadd.f32 %v1997, %v2181
        %v2183 = vpop.f32.mrf.mxu0
        %2184 = vmatprep.mubr.f32.mxu0 0.0
        %2185 = vmatmul.mubr.f32.gmra.mxu0 %v2042
        %v2186 = vpop.f32.mrf.mxu0
        %v2187 = vadd.f32 %v1997, %v2186
        %v2188 = vpop.f32.mrf.mxu0
        %2189 = vmatprep.mubr.f32.mxu0 0.0
        %2190 = vmatmul.mubr.f32.gmra.mxu0 %v2045
        %v2191 = vpop.f32.mrf.mxu0
        %v2192 = vadd.f32 %v1997, %v2191
        %v2193 = vpop.f32.mrf.mxu0
        %2194 = vdwg.mxu0
        %v2195 = vmax.f32 %v2117, 0.0
        %v2196 = vmax.f32 %v2122, 0.0
        %v2197 = vmax.f32 %v2127, 0.0
        %v2198 = vmax.f32 %v2132, 0.0
        %v2199 = vmax.f32 %v2137, 0.0
        %v2200 = vmax.f32 %v2142, 0.0
        %v2201 = vmax.f32 %v2147, 0.0
        %v2202 = vmax.f32 %v2152, 0.0
        %v2203 = vmax.f32 %v2157, 0.0
        %v2204 = vmax.f32 %v2162, 0.0
        %v2205 = vmax.f32 %v2167, 0.0
        %v2206 = vmax.f32 %v2172, 0.0
        %v2207 = vmax.f32 %v2177, 0.0
        %v2208 = vmax.f32 %v2182, 0.0
        %v2209 = vmax.f32 %v2187, 0.0
        %v2210 = vmax.f32 %v2192, 0.0
        %v2211 = vadd.f32 %v2195, %v1913
        %v2212 = vadd.f32 %v2196, %v1918
        %v2213 = vadd.f32 %v2197, %v1923
        %v2214 = vadd.f32 %v2198, %v1928
        %v2215 = vadd.f32 %v2199, %v1933
        %v2216 = vadd.f32 %v2200, %v1938
        %v2217 = vadd.f32 %v2201, %v1943
        %v2218 = vadd.f32 %v2202, %v1948
        %v2219 = vadd.f32 %v2203, %v1953
        %v2220 = vadd.f32 %v2204, %v1958
        %v2221 = vadd.f32 %v2205, %v1963
        %v2222 = vadd.f32 %v2206, %v1968
        %v2223 = vadd.f32 %v2207, %v1973
        %v2224 = vadd.f32 %v2208, %v1978
        %v2225 = vadd.f32 %v2209, %v1983
        %v2226 = vadd.f32 %v2210, %v1988
        %2227 = vst.msk [vmem:[%s395] sm:$0xff] %vm422, %v2211
        %2228 = vst.msk [vmem:[%s395 + $0x8] sm:$0xff] %vm422, %v2212
        %2229 = vst.msk [vmem:[%s395 + $0x10] sm:$0xff] %vm422, %v2213
        %2230 = vst.msk [vmem:[%s395 + $0x18] sm:$0xff] %vm422, %v2214
        %2231 = vst.msk [vmem:[%s395 + $0x20] sm:$0xff] %vm422, %v2215
        %2232 = vst.msk [vmem:[%s395 + $0x28] sm:$0xff] %vm422, %v2216
        %2233 = vst.msk [vmem:[%s395 + $0x30] sm:$0xff] %vm422, %v2217
        %2234 = vst.msk [vmem:[%s395 + $0x38] sm:$0xff] %vm422, %v2218
        %2235 = vst.msk [vmem:[%s395 + $0x40] sm:$0xff] %vm422, %v2219
        %2236 = vst.msk [vmem:[%s395 + $0x48] sm:$0xff] %vm422, %v2220
        %2237 = vst.msk [vmem:[%s395 + $0x50] sm:$0xff] %vm422, %v2221
        %2238 = vst.msk [vmem:[%s395 + $0x58] sm:$0xff] %vm422, %v2222
        %2239 = vst.msk [vmem:[%s395 + $0x60] sm:$0xff] %vm422, %v2223
        %2240 = vst.msk [vmem:[%s395 + $0x68] sm:$0xff] %vm422, %v2224
        %2241 = vst.msk [vmem:[%s395 + $0x70] sm:$0xff] %vm422, %v2225
        %2242 = vst.msk [vmem:[%s395 + $0x78] sm:$0xff] %vm422, %v2226
        %s2243 = sand.u32 %s200, 1
        %s2244 = sand.u32 %s200, 1
        %s2245 = smul.addr %s2244, 128
        %s2246 = scalar_lea.vmem [#allocation5], %s2245
        // Predicated region
        $region91: #{tpu_custom_call.1} parent=85 // pred_check
          %p2247 = pneg %p210
        $region92: #{tpu_custom_call.1} parent=85 // pred_check_branch
          %2249 = sbr.rel (%p2247) target = $region94
        $region93: #{tpu_custom_call.1} parent=85 // pred_region
          %s2250 = smul.u32 2, %s19
          %s2251 = smul.addr %s2250, 8
          %s2252 = scalar_lea.vmem %s8, %s2251
          // Predicated region
          $region95: #{tpu_custom_call.1} parent=93 // pred_check
            _
          $region96: #{tpu_custom_call.1} parent=93 // pred_check_branch
            %2254 = sbr.rel (0) target = $region98
          $region97: #{tpu_custom_call.1} parent=93 // pred_region
            // Predicated region
            $region99: #{tpu_custom_call.1} parent=97 // pred_check
              _
            $region100: #{tpu_custom_call.1} parent=97 // pred_check_branch
              %2256 = sbr.rel (0) target = $region102
            $region101: #{tpu_custom_call.1} parent=97 // pred_region
              // Predicated region
              $region114: #{tpu_custom_call.1} parent=101 // pred_check
                _
              $region115: #{tpu_custom_call.1} parent=101 // pred_check_branch
                %2302 = sbr.rel (0) target = $region117
              $region116: #{tpu_custom_call.1} parent=101 // pred_region
                loop: start=0, step=1, limit=1
                $region118: #{tpu_custom_call.1} parent=116 // loop_pre_header
                  _
                $region119: #{tpu_custom_call.1} parent=116 // loop_header
                  %s2304 = sphi 0, %s2308
                  %p2305 = scmp.ge.s32.totalorder %s2304, 1
                  %s2309 = sphi %s2246, %s2246
                  %s2310 = sphi %s2252, %s2252
                $region120: #{tpu_custom_call.1} parent=116 // loop_header_branch
                  %2307 = sbr.rel (%p2305) target = $region124
                $region121: #{tpu_custom_call.1} parent=116 // loop_body
                  %v2311 = vld [vmem:[%s2309] sm:$0xff]
                  %2312 = vst [vmem:[%s2310] sm:$0xff] %v2311
                  %v2313 = vld [vmem:[%s2309 + $0x8] sm:$0xff]
                  %2314 = vst [vmem:[%s2310 + $0x8] sm:$0xff] %v2313
                  %v2315 = vld [vmem:[%s2309 + $0x10] sm:$0xff]
                  %2316 = vst [vmem:[%s2310 + $0x20] sm:$0xff] %v2315
                  %v2317 = vld [vmem:[%s2309 + $0x18] sm:$0xff]
                  %2318 = vst [vmem:[%s2310 + $0x28] sm:$0xff] %v2317
                  %v2319 = vld [vmem:[%s2309 + $0x20] sm:$0xff]
                  %2320 = vst [vmem:[%s2310 + $0x40] sm:$0xff] %v2319
                  %v2321 = vld [vmem:[%s2309 + $0x28] sm:$0xff]
                  %2322 = vst [vmem:[%s2310 + $0x48] sm:$0xff] %v2321
                  %v2323 = vld [vmem:[%s2309 + $0x30] sm:$0xff]
                  %2324 = vst [vmem:[%s2310 + $0x60] sm:$0xff] %v2323
                  %v2325 = vld [vmem:[%s2309 + $0x38] sm:$0xff]
                  %2326 = vst [vmem:[%s2310 + $0x68] sm:$0xff] %v2325
                  %v2327 = vld [vmem:[%s2309 + $0x40] sm:$0xff]
                  %2328 = vst [vmem:[%s2310 + $0x80] sm:$0xff] %v2327
                  %v2329 = vld [vmem:[%s2309 + $0x48] sm:$0xff]
                  %2330 = vst [vmem:[%s2310 + $0x88] sm:$0xff] %v2329
                  %v2331 = vld [vmem:[%s2309 + $0x50] sm:$0xff]
                  %2332 = vst [vmem:[%s2310 + $0xa0] sm:$0xff] %v2331
                  %v2333 = vld [vmem:[%s2309 + $0x58] sm:$0xff]
                  %2334 = vst [vmem:[%s2310 + $0xa8] sm:$0xff] %v2333
                  %v2335 = vld [vmem:[%s2309 + $0x60] sm:$0xff]
                  %2336 = vst [vmem:[%s2310 + $0xc0] sm:$0xff] %v2335
                  %v2337 = vld [vmem:[%s2309 + $0x68] sm:$0xff]
                  %2338 = vst [vmem:[%s2310 + $0xc8] sm:$0xff] %v2337
                  %v2339 = vld [vmem:[%s2309 + $0x70] sm:$0xff]
                  %2340 = vst [vmem:[%s2310 + $0xe0] sm:$0xff] %v2339
                  %v2341 = vld [vmem:[%s2309 + $0x78] sm:$0xff]
                  %2342 = vst [vmem:[%s2310 + $0xe8] sm:$0xff] %v2341
                $region122: #{tpu_custom_call.1} parent=116 // loop_footer
                  %s2308 = sadd.s32 1, %s2304
                $region123: #{tpu_custom_call.1} parent=116 // loop_footer_branch
                  %2303 = sbr.rel target = $region119
                $region124: #{tpu_custom_call.1} parent=116 // loop_exit
                  _
              $region117: #{tpu_custom_call.1} parent=101 // pred_fallthru
                _
              // Predicated region
              $region125: #{tpu_custom_call.1} parent=101 // pred_check
                _
              $region126: #{tpu_custom_call.1} parent=101 // pred_check_branch
                %2344 = sbr.rel target = $region128
              $region127: #{tpu_custom_call.1} parent=101 // pred_region
                _
              $region128: #{tpu_custom_call.1} parent=101 // pred_fallthru
                _
            $region102: #{tpu_custom_call.1} parent=97 // pred_fallthru
              _
            // Predicated region
            $region103: #{tpu_custom_call.1} parent=97 // pred_check
              _
            $region104: #{tpu_custom_call.1} parent=97 // pred_check_branch
              %2258 = sbr.rel target = $region106
            $region105: #{tpu_custom_call.1} parent=97 // pred_region
              %s2260 = ssub.s32 256, 1
              loop: start=0, step=1, limit=1
              $region107: #{tpu_custom_call.1} parent=105 // loop_pre_header
                _
              $region108: #{tpu_custom_call.1} parent=105 // loop_header
                %s2262 = sphi 0, %s2266
                %p2263 = scmp.ge.s32.totalorder %s2262, 1
                %s2267 = sphi %s2246, %s2246
                %s2268 = sphi %s2252, %s2252
              $region109: #{tpu_custom_call.1} parent=105 // loop_header_branch
                %2265 = sbr.rel (%p2263) target = $region113
              $region110: #{tpu_custom_call.1} parent=105 // loop_body
                %v2269 = vld [vmem:[%s2267] sm:%s2260]
                %2270 = vst [vmem:[%s2268] sm:%s2260] %v2269
                %v2271 = vld [vmem:[%s2267 + $0x8] sm:%s2260]
                %2272 = vst [vmem:[%s2268 + $0x8] sm:%s2260] %v2271
                %v2273 = vld [vmem:[%s2267 + $0x10] sm:%s2260]
                %2274 = vst [vmem:[%s2268 + $0x20] sm:%s2260] %v2273
                %v2275 = vld [vmem:[%s2267 + $0x18] sm:%s2260]
                %2276 = vst [vmem:[%s2268 + $0x28] sm:%s2260] %v2275
                %v2277 = vld [vmem:[%s2267 + $0x20] sm:%s2260]
                %2278 = vst [vmem:[%s2268 + $0x40] sm:%s2260] %v2277
                %v2279 = vld [vmem:[%s2267 + $0x28] sm:%s2260]
                %2280 = vst [vmem:[%s2268 + $0x48] sm:%s2260] %v2279
                %v2281 = vld [vmem:[%s2267 + $0x30] sm:%s2260]
                %2282 = vst [vmem:[%s2268 + $0x60] sm:%s2260] %v2281
                %v2283 = vld [vmem:[%s2267 + $0x38] sm:%s2260]
                %2284 = vst [vmem:[%s2268 + $0x68] sm:%s2260] %v2283
                %v2285 = vld [vmem:[%s2267 + $0x40] sm:%s2260]
                %2286 = vst [vmem:[%s2268 + $0x80] sm:%s2260] %v2285
                %v2287 = vld [vmem:[%s2267 + $0x48] sm:%s2260]
                %2288 = vst [vmem:[%s2268 + $0x88] sm:%s2260] %v2287
                %v2289 = vld [vmem:[%s2267 + $0x50] sm:%s2260]
                %2290 = vst [vmem:[%s2268 + $0xa0] sm:%s2260] %v2289
                %v2291 = vld [vmem:[%s2267 + $0x58] sm:%s2260]
                %2292 = vst [vmem:[%s2268 + $0xa8] sm:%s2260] %v2291
                %v2293 = vld [vmem:[%s2267 + $0x60] sm:%s2260]
                %2294 = vst [vmem:[%s2268 + $0xc0] sm:%s2260] %v2293
                %v2295 = vld [vmem:[%s2267 + $0x68] sm:%s2260]
                %2296 = vst [vmem:[%s2268 + $0xc8] sm:%s2260] %v2295
                %v2297 = vld [vmem:[%s2267 + $0x70] sm:%s2260]
                %2298 = vst [vmem:[%s2268 + $0xe0] sm:%s2260] %v2297
                %v2299 = vld [vmem:[%s2267 + $0x78] sm:%s2260]
                %2300 = vst [vmem:[%s2268 + $0xe8] sm:%s2260] %v2299
              $region111: #{tpu_custom_call.1} parent=105 // loop_footer
                %s2266 = sadd.s32 1, %s2262
              $region112: #{tpu_custom_call.1} parent=105 // loop_footer_branch
                %2261 = sbr.rel target = $region108
              $region113: #{tpu_custom_call.1} parent=105 // loop_exit
                _
            $region106: #{tpu_custom_call.1} parent=97 // pred_fallthru
              _
          $region98: #{tpu_custom_call.1} parent=93 // pred_fallthru
            _
          %2345 = vnop
        $region94: #{tpu_custom_call.1} parent=85 // pred_fallthru
          _
      $region86: #{tpu_custom_call.1} parent=5 // pred_fallthru
        _
      %p2346 = scmp.le.s32.totalorder 2, %s14
      // Predicated region
      $region129: #{tpu_custom_call.1} parent=5 // pred_check
        %p2347 = pneg %p2346
      $region130: #{tpu_custom_call.1} parent=5 // pred_check_branch
        %2349 = sbr.rel (%p2347) target = $region132
      $region131: #{tpu_custom_call.1} parent=5 // pred_region
        %s2350 = ssub.s32 %s14, 2
        // Predicated region
        $region133: #{tpu_custom_call.1} parent=131 // pred_check
          %p2351 = pneg %p216
        $region134: #{tpu_custom_call.1} parent=131 // pred_check_branch
          %2353 = sbr.rel (%p2351) target = $region136
        $region135: #{tpu_custom_call.1} parent=131 // pred_region
          %s2354 = sand.u32 %s201, 1
          %s2355 = sand.u32 %s201, 1
          %s2356 = smul.addr %s2355, 128
          %s2357 = scalar_lea.vmem [#allocation5], %s2356
        $region136: #{tpu_custom_call.1} parent=131 // pred_fallthru
          _
      $region132: #{tpu_custom_call.1} parent=5 // pred_fallthru
        _
    $region6: #{tpu_custom_call.1} parent=1 // loop_footer
      %s18 = sadd.s32 1, %s14
    $region7: #{tpu_custom_call.1} parent=1 // loop_footer_branch
      %13 = sbr.rel target = $region3
    $region8: #{tpu_custom_call.1} parent=1 // loop_exit
      _

</llo_original>
